<compile_context>
chip_gen: v7x
topology: tpu7x:2x2x1
jax: 0.10.0
libtpu: 0.0.40
codegen_flags: <defaults>
</compile_context>

<pallas_src>
import functools
import math

import jax
import jax.numpy as jnp
import numpy as np
from jax.experimental import pallas as pl
from jax.experimental.pallas import tpu as pltpu


# ----------------------------------------------------------------------------
# Kernel: one grid step handles a block of BB batch elements.
# ----------------------------------------------------------------------------
def coattention_kernel(recv_ref, attf_ref, wkt_ref, wqbd_ref, bias_ref,
                       aseg_ref, out_ref, *, cubic_dtype):
    bb = attf_ref.shape[0]            # batch elements in this block
    rows = recv_ref.shape[0]          # BB * S_r (receiver pre-flattened)
    s_r = rows // bb

    # Projections for the whole batch block: one MXU matmul each, f32 accum.
    keys_t = jnp.dot(recv_ref[...], wkt_ref[...],
                     preferred_element_type=jnp.float32)        # (BB*S_r, S_a*H)
    q_flat = jnp.dot(attf_ref[...], wqbd_ref[...],
                     preferred_element_type=jnp.float32)        # (BB, S_a*H)
    q_flat = q_flat + bias_ref[...]                             # bias folded once

    # Cubic stage (hot path), lane-dense: last axis is S_a*H (=128 here).
    # Leading-dim split only -> metadata reshape; cubic_dtype is bf16 on
    # v6e/v7x (bf16 EUP/VPU), f32 elsewhere.
    k3 = keys_t.reshape(bb, s_r, -1).astype(cubic_dtype)
    q3 = q_flat.astype(cubic_dtype)[:, None, :]
    t = jnp.tanh(k3 + q3)                                       # (BB, S_r, S_a*H)

    # Segmented "sum_h tanh(e)[.., a*H+h] * a[h]" as one MXU matmul against the
    # constant block-diagonal a-matrix, zero-padded to 128 output lanes so the
    # store below is unmasked / lane-dense.
    scores = jnp.dot(t.reshape(rows, -1), aseg_ref[...],
                     preferred_element_type=jnp.float32)        # (BB*S_r, 128)
    out_ref[...] = scores.astype(out_ref.dtype)


# ----------------------------------------------------------------------------
# One-time builder: restructure weights once, return a jitted forward closure.
# ----------------------------------------------------------------------------
def make_coattention_forward(w_k, w_q, bias, a, *, batch, seq_r, seq_a,
                             n_features, cubic_dtype, block_b,
                             single_buffer_consts=True):
    H = w_k.shape[1]
    SaH = seq_a * H
    lanes = -(-seq_a // 128) * 128                       # lane-dense output width
    assert batch % block_b == 0

    # --- one-time weight restructuring (exact in f32) ------------------------
    wk_t = jnp.tile(w_k, (1, seq_a))                                   # (F, Sa*H)
    wq_bd = jnp.kron(jnp.eye(seq_a, dtype=w_q.dtype), w_q)             # (Sa*F, Sa*H)
    bias_t = jnp.tile(bias, seq_a).reshape(1, SaH)                     # (1, Sa*H)
    a_seg = jnp.kron(jnp.eye(seq_a, dtype=a.dtype), a.reshape(H, 1))   # (Sa*H, Sa)
    a_seg = jnp.pad(a_seg, ((0, 0), (0, lanes - seq_a))).astype(cubic_dtype)

    def const_spec(shape):
        # Grid-constant operands: index_map is (0,0) for every step, so double
        # buffering only wastes VMEM -> request single buffering.
        if single_buffer_consts:
            return pl.BlockSpec(shape, lambda g: (0, 0),
                                pipeline_mode=pl.Buffered(1))
        return pl.BlockSpec(shape, lambda g: (0, 0))

    kern = functools.partial(coattention_kernel, cubic_dtype=cubic_dtype)

    call = pl.pallas_call(
        kern,
        out_shape=jax.ShapeDtypeStruct((batch * seq_r, lanes), jnp.float32),
        grid_spec=pltpu.PrefetchScalarGridSpec(
            num_scalar_prefetch=0,
            grid=(batch // block_b,),
            in_specs=[
                # receiver, pre-flattened to 2-D -> keys matmul M dim explicit
                pl.BlockSpec((block_b * seq_r, n_features), lambda g: (g, 0)),
                # attendant, flattened to (B, Sa*F)
                pl.BlockSpec((block_b, seq_a * n_features), lambda g: (g, 0)),
                const_spec((n_features, SaH)),          # tiled w_k
                const_spec((seq_a * n_features, SaH)),  # block-diag w_q
                const_spec((1, SaH)),                   # tiled bias
                const_spec((SaH, lanes)),               # block-diag a (lane-padded)
            ],
            out_specs=pl.BlockSpec((block_b * seq_r, lanes), lambda g: (g, 0)),
        ),
        # No vmem_limit override: live footprint per step is <1 MiB at these
        # shapes; re-derive a budget only when S_r/S_a grow (esp. v7x 64 MiB).
        compiler_params=pltpu.CompilerParams(
            dimension_semantics=("parallel",),
        ),
    )

    @jax.jit
    def forward(receiver, attendant):
        recv2d = receiver.reshape(batch * seq_r, n_features)   # metadata reshape
        attf = attendant.reshape(batch, seq_a * n_features)
        out = call(recv2d, attf, wk_t, wq_bd, bias_t, a_seg)   # (B*S_r, lanes)
        return out[:, :seq_a].reshape(batch, seq_r, seq_a)

    return forward


# ----------------------------------------------------------------------------
# Generation-aware configuration.
# ----------------------------------------------------------------------------
def _tpu_generation():
    try:
        kind = jax.devices()[0].device_kind.lower()
    except Exception:
        return "other"
    if "v5e" in kind or "v5 lite" in kind or "v5lite" in kind:
        return "v5e"
    if "v6" in kind:
        return "v6e"
    if "v7" in kind or "7x" in kind:
        return "v7x"
    return "other"


def _pick_config(batch, gen):
    """Returns (block_b, cubic_dtype)."""
    if gen == "v7x":
        # 2 TensorCores/chip: keep >= 2 "parallel" grid steps; largest divisor.
        bb = 1
        for cand in range(batch // 2, 0, -1):
            if batch % cand == 0:
                bb = cand
                break
        return bb, jnp.bfloat16       # bf16 EUP/VPU + halved cubic VMEM
    if gen == "v6e":
        return batch, jnp.bfloat16    # single TC: grid=1; bf16 EUP/VPU
    # v5e / unknown: no bf16 EUP/VPU benefit -> stay f32; single TC -> grid=1.
    return batch, jnp.float32


# ----------------------------------------------------------------------------
# Deterministic parameter init (mirrors nn.init.xavier_uniform_ bounds).
# ----------------------------------------------------------------------------
def init_params(key, n_features):
    H = n_features // 2
    k1, k2, k3, k4 = jax.random.split(key, 4)

    b_wq = math.sqrt(6.0 / (n_features + H))
    w_q = jax.random.uniform(k1, (n_features, H), jnp.float32, -b_wq, b_wq)
    w_k = jax.random.uniform(k2, (n_features, H), jnp.float32, -b_wq, b_wq)

    b_v = math.sqrt(6.0 / (H + 1))
    bias = jax.random.uniform(k3, (H,), jnp.float32, -b_v, b_v)
    a = jax.random.uniform(k4, (H,), jnp.float32, -b_v, b_v)
    return w_q, w_k, bias, a


# Pure-JAX reference for verification.
def coattention_ref(receiver, attendant, w_k, w_q, bias, a):
    keys = receiver @ w_k
    queries = attendant @ w_q
    e = queries[..., None, :, :] + keys[..., :, None, :] + bias
    return jnp.tanh(e) @ a


if __name__ == "__main__":
    # batch, seq (substructures), n_features.  S_a*H = 8*16 = 128 -> lane-dense
    # cubic stage; B=16 gives 2 batch-blocked steps on v7x, 1 step elsewhere.
    B, S, F = 16, 8, 32

    key = jax.random.PRNGKey(0)
    kp, kr, ka = jax.random.split(key, 3)

    w_q, w_k, bias, a = init_params(kp, F)
    receiver = jax.random.normal(kr, (B, S, F), jnp.float32)
    attendant = jax.random.normal(ka, (B, S, F), jnp.float32)

    gen = _tpu_generation()
    block_b, cubic_dtype = _pick_config(B, gen)

    build = functools.partial(
        make_coattention_forward, w_k, w_q, bias, a,
        batch=B, seq_r=S, seq_a=S, n_features=F,
        cubic_dtype=cubic_dtype, block_b=block_b)

    forward = build(single_buffer_consts=True)
    try:
        out = jax.block_until_ready(forward(receiver, attendant))
    except Exception:
        # Fallback if this JAX build rejects single-buffered pl.Buffered(1).
        forward = build(single_buffer_consts=False)
        out = jax.block_until_ready(forward(receiver, attendant))

    ref = coattention_ref(receiver, attendant, w_k, w_q, bias, a)
    # bf16 cubic stage on v6e/v7x needs a looser check; f32 path stays tight.
    tol = 5e-2 if cubic_dtype == jnp.bfloat16 else 2e-5
    np.testing.assert_allclose(np.asarray(out), np.asarray(ref),
                               rtol=tol, atol=tol)

    print("KERNEL_OK")
</pallas_src>

<mosaic_0001>
module attributes {stable_mosaic.version = 11 : i64} {
  func.func @coattention_kernel(%arg0: i32, %arg1: memref<128x32xf32, #tpu.memory_space<vmem>>, %arg2: memref<16x256xf32, #tpu.memory_space<vmem>>, %arg3: memref<32x128xf32, #tpu.memory_space<vmem>>, %arg4: memref<256x128xf32, #tpu.memory_space<vmem>>, %arg5: memref<1x128xf32, #tpu.memory_space<vmem>>, %arg6: memref<128x128xf32, #tpu.memory_space<vmem>>, %arg7: memref<128x128xf32, #tpu.memory_space<vmem>>) attributes {dimension_semantics = [#tpu.dimension_semantics<parallel>], iteration_bounds = array<i64: 1>, scalar_prefetch = 0 : i64, scratch_operands = 0 : i64, tpu.core_type = #tpu.core_type<tc>, window_params = [{transform_indices = @transform_0, window_bounds = array<i64: 128, 32>}, {transform_indices = @transform_1, window_bounds = array<i64: 16, 256>}, {pipeline_mode = #tpu.pipeline_mode<synchronous>, transform_indices = @transform_2, window_bounds = array<i64: 32, 128>}, {pipeline_mode = #tpu.pipeline_mode<synchronous>, transform_indices = @transform_3, window_bounds = array<i64: 256, 128>}, {pipeline_mode = #tpu.pipeline_mode<synchronous>, transform_indices = @transform_4, window_bounds = array<i64: 1, 128>}, {pipeline_mode = #tpu.pipeline_mode<synchronous>, transform_indices = @transform_5, window_bounds = array<i64: 128, 128>}, {transform_indices = @transform_6, window_bounds = array<i64: 128, 128>}]} {
    %c0 = arith.constant 0 : index
    %c0_0 = arith.constant 0 : index
    %0 = vector.load %arg1[%c0, %c0_0] : memref<128x32xf32, #tpu.memory_space<vmem>>, vector<128x32xf32>
    %c0_1 = arith.constant 0 : index
    %c0_2 = arith.constant 0 : index
    %1 = vector.load %arg3[%c0_1, %c0_2] : memref<32x128xf32, #tpu.memory_space<vmem>>, vector<32x128xf32>
    %cst = arith.constant dense<0.000000e+00> : vector<128x128xf32>
    %2 = tpu.matmul %0, %1, %cst {dimension_numbers = #tpu.dot_dimension_numbers<[1], [0], [0], [1], [0, 0, 1, 1], [], []>} : vector<128x32xf32>, vector<32x128xf32>, vector<128x128xf32> -> vector<128x128xf32>
    %c0_3 = arith.constant 0 : index
    %c0_4 = arith.constant 0 : index
    %3 = vector.load %arg2[%c0_3, %c0_4] : memref<16x256xf32, #tpu.memory_space<vmem>>, vector<16x256xf32>
    %c0_5 = arith.constant 0 : index
    %c0_6 = arith.constant 0 : index
    %4 = vector.load %arg4[%c0_5, %c0_6] : memref<256x128xf32, #tpu.memory_space<vmem>>, vector<256x128xf32>
    %cst_7 = arith.constant dense<0.000000e+00> : vector<16x128xf32>
    %5 = tpu.matmul %3, %4, %cst_7 {dimension_numbers = #tpu.dot_dimension_numbers<[1], [0], [0], [1], [0, 0, 1, 1], [], []>} : vector<16x256xf32>, vector<256x128xf32>, vector<16x128xf32> -> vector<16x128xf32>
    %c0_8 = arith.constant 0 : index
    %c0_9 = arith.constant 0 : index
    %6 = vector.load %arg5[%c0_8, %c0_9] : memref<1x128xf32, #tpu.memory_space<vmem>>, vector<1x128xf32>
    %7 = vector.broadcast %6 : vector<1x128xf32> to vector<16x128xf32>
    %8 = arith.addf %5, %7 : vector<16x128xf32>
    %9 = vector.shape_cast %2 : vector<128x128xf32> to vector<16x8x128xf32>
    %10 = vector.shape_cast %8 : vector<16x128xf32> to vector<16x1x128xf32>
    %11 = vector.broadcast %10 : vector<16x1x128xf32> to vector<16x8x128xf32>
    %12 = arith.addf %9, %11 : vector<16x8x128xf32>
    %13 = math.tanh %12 : vector<16x8x128xf32>
    %14 = vector.shape_cast %13 : vector<16x8x128xf32> to vector<128x128xf32>
    %c0_10 = arith.constant 0 : index
    %c0_11 = arith.constant 0 : index
    %15 = vector.load %arg6[%c0_10, %c0_11] : memref<128x128xf32, #tpu.memory_space<vmem>>, vector<128x128xf32>
    %cst_12 = arith.constant dense<0.000000e+00> : vector<128x128xf32>
    %16 = tpu.matmul %14, %15, %cst_12 {dimension_numbers = #tpu.dot_dimension_numbers<[1], [0], [0], [1], [0, 0, 1, 1], [], []>} : vector<128x128xf32>, vector<128x128xf32>, vector<128x128xf32> -> vector<128x128xf32>
    %c0_13 = arith.constant 0 : index
    %c0_14 = arith.constant 0 : index
    %17 = vector.load %arg7[%c0_13, %c0_14] : memref<128x128xf32, #tpu.memory_space<vmem>>, vector<128x128xf32>
    tpu.vector_store %arg7[%c0_13, %c0_14], %16 {strides = array<i32>} : memref<128x128xf32, #tpu.memory_space<vmem>>, vector<128x128xf32>,
    return
  }
  func.func @transform_0(%arg0: i32) -> (i32, i32) {
    %c0_i32 = arith.constant 0 : i32
    %c0_i32_0 = arith.constant 0 : i32
    return %arg0, %c0_i32 : i32, i32
  }
  func.func @transform_1(%arg0: i32) -> (i32, i32) {
    %c0_i32 = arith.constant 0 : i32
    %c0_i32_0 = arith.constant 0 : i32
    return %arg0, %c0_i32 : i32, i32
  }
  func.func @transform_2(%arg0: i32) -> (i32, i32) {
    %c0_i32 = arith.constant 0 : i32
    %c0_i32_0 = arith.constant 0 : i32
    %c0_i32_1 = arith.constant 0 : i32
    return %c0_i32, %c0_i32_0 : i32, i32
  }
  func.func @transform_3(%arg0: i32) -> (i32, i32) {
    %c0_i32 = arith.constant 0 : i32
    %c0_i32_0 = arith.constant 0 : i32
    %c0_i32_1 = arith.constant 0 : i32
    return %c0_i32, %c0_i32_0 : i32, i32
  }
  func.func @transform_4(%arg0: i32) -> (i32, i32) {
    %c0_i32 = arith.constant 0 : i32
    %c0_i32_0 = arith.constant 0 : i32
    %c0_i32_1 = arith.constant 0 : i32
    return %c0_i32, %c0_i32_0 : i32, i32
  }
  func.func @transform_5(%arg0: i32) -> (i32, i32) {
    %c0_i32 = arith.constant 0 : i32
    %c0_i32_0 = arith.constant 0 : i32
    %c0_i32_1 = arith.constant 0 : i32
    return %c0_i32, %c0_i32_0 : i32, i32
  }
  func.func @transform_6(%arg0: i32) -> (i32, i32) {
    %c0_i32 = arith.constant 0 : i32
    %c0_i32_0 = arith.constant 0 : i32
    return %arg0, %c0_i32 : i32, i32
  }
}

module attributes {stable_mosaic.version = 11 : i64} {
  func.func @coattention_kernel(%arg0: i32, %arg1: memref<128x32xf32, #tpu.memory_space<vmem>>, %arg2: memref<16x256xf32, #tpu.memory_space<vmem>>, %arg3: memref<32x128xf32, #tpu.memory_space<vmem>>, %arg4: memref<256x128xf32, #tpu.memory_space<vmem>>, %arg5: memref<1x128xf32, #tpu.memory_space<vmem>>, %arg6: memref<128x128xf32, #tpu.memory_space<vmem>>, %arg7: memref<128x128xf32, #tpu.memory_space<vmem>>) attributes {dimension_semantics = [#tpu.dimension_semantics<parallel>], iteration_bounds = array<i64: 1>, scalar_prefetch = 0 : i64, scratch_operands = 0 : i64, tpu.core_type = #tpu.core_type<tc>, window_params = [{transform_indices = @transform_0, window_bounds = array<i64: 128, 32>}, {transform_indices = @transform_1, window_bounds = array<i64: 16, 256>}, {pipeline_mode = #tpu.pipeline_mode<synchronous>, transform_indices = @transform_2, window_bounds = array<i64: 32, 128>}, {pipeline_mode = #tpu.pipeline_mode<synchronous>, transform_indices = @transform_3, window_bounds = array<i64: 256, 128>}, {pipeline_mode = #tpu.pipeline_mode<synchronous>, transform_indices = @transform_4, window_bounds = array<i64: 1, 128>}, {pipeline_mode = #tpu.pipeline_mode<synchronous>, transform_indices = @transform_5, window_bounds = array<i64: 128, 128>}, {transform_indices = @transform_6, window_bounds = array<i64: 128, 128>}]} {
    %c0 = arith.constant 0 : index
    %c0_0 = arith.constant 0 : index
    %0 = vector.load %arg1[%c0, %c0_0] : memref<128x32xf32, #tpu.memory_space<vmem>>, vector<128x32xf32>
    %c0_1 = arith.constant 0 : index
    %c0_2 = arith.constant 0 : index
    %1 = vector.load %arg3[%c0_1, %c0_2] : memref<32x128xf32, #tpu.memory_space<vmem>>, vector<32x128xf32>
    %cst = arith.constant dense<0.000000e+00> : vector<128x128xf32>
    %2 = tpu.matmul %0, %1, %cst {dimension_numbers = #tpu.dot_dimension_numbers<[1], [0], [0], [1], [0, 0, 1, 1], [], []>} : vector<128x32xf32>, vector<32x128xf32>, vector<128x128xf32> -> vector<128x128xf32>
    %c0_3 = arith.constant 0 : index
    %c0_4 = arith.constant 0 : index
    %3 = vector.load %arg2[%c0_3, %c0_4] : memref<16x256xf32, #tpu.memory_space<vmem>>, vector<16x256xf32>
    %c0_5 = arith.constant 0 : index
    %c0_6 = arith.constant 0 : index
    %4 = vector.load %arg4[%c0_5, %c0_6] : memref<256x128xf32, #tpu.memory_space<vmem>>, vector<256x128xf32>
    %cst_7 = arith.constant dense<0.000000e+00> : vector<16x128xf32>
    %5 = tpu.matmul %3, %4, %cst_7 {dimension_numbers = #tpu.dot_dimension_numbers<[1], [0], [0], [1], [0, 0, 1, 1], [], []>} : vector<16x256xf32>, vector<256x128xf32>, vector<16x128xf32> -> vector<16x128xf32>
    %c0_8 = arith.constant 0 : index
    %c0_9 = arith.constant 0 : index
    %6 = vector.load %arg5[%c0_8, %c0_9] : memref<1x128xf32, #tpu.memory_space<vmem>>, vector<1x128xf32>
    %7 = vector.broadcast %6 : vector<1x128xf32> to vector<16x128xf32>
    %8 = arith.addf %5, %7 : vector<16x128xf32>
    %9 = vector.shape_cast %2 : vector<128x128xf32> to vector<16x8x128xf32>
    %10 = vector.shape_cast %8 : vector<16x128xf32> to vector<16x1x128xf32>
    %11 = vector.broadcast %10 : vector<16x1x128xf32> to vector<16x8x128xf32>
    %12 = arith.addf %9, %11 : vector<16x8x128xf32>
    %13 = math.tanh %12 : vector<16x8x128xf32>
    %14 = vector.shape_cast %13 : vector<16x8x128xf32> to vector<128x128xf32>
    %c0_10 = arith.constant 0 : index
    %c0_11 = arith.constant 0 : index
    %15 = vector.load %arg6[%c0_10, %c0_11] : memref<128x128xf32, #tpu.memory_space<vmem>>, vector<128x128xf32>
    %cst_12 = arith.constant dense<0.000000e+00> : vector<128x128xf32>
    %16 = tpu.matmul %14, %15, %cst_12 {dimension_numbers = #tpu.dot_dimension_numbers<[1], [0], [0], [1], [0, 0, 1, 1], [], []>} : vector<128x128xf32>, vector<128x128xf32>, vector<128x128xf32> -> vector<128x128xf32>
    %c0_13 = arith.constant 0 : index
    %c0_14 = arith.constant 0 : index
    %17 = vector.load %arg7[%c0_13, %c0_14] : memref<128x128xf32, #tpu.memory_space<vmem>>, vector<128x128xf32>
    tpu.vector_store %arg7[%c0_13, %c0_14], %16 {strides = array<i32>} : memref<128x128xf32, #tpu.memory_space<vmem>>, vector<128x128xf32>,
    return
  }
  func.func @transform_0(%arg0: i32) -> (i32, i32) {
    %c0_i32 = arith.constant 0 : i32
    %c0_i32_0 = arith.constant 0 : i32
    return %arg0, %c0_i32 : i32, i32
  }
  func.func @transform_1(%arg0: i32) -> (i32, i32) {
    %c0_i32 = arith.constant 0 : i32
    %c0_i32_0 = arith.constant 0 : i32
    return %arg0, %c0_i32 : i32, i32
  }
  func.func @transform_2(%arg0: i32) -> (i32, i32) {
    %c0_i32 = arith.constant 0 : i32
    %c0_i32_0 = arith.constant 0 : i32
    %c0_i32_1 = arith.constant 0 : i32
    return %c0_i32, %c0_i32_0 : i32, i32
  }
  func.func @transform_3(%arg0: i32) -> (i32, i32) {
    %c0_i32 = arith.constant 0 : i32
    %c0_i32_0 = arith.constant 0 : i32
    %c0_i32_1 = arith.constant 0 : i32
    return %c0_i32, %c0_i32_0 : i32, i32
  }
  func.func @transform_4(%arg0: i32) -> (i32, i32) {
    %c0_i32 = arith.constant 0 : i32
    %c0_i32_0 = arith.constant 0 : i32
    %c0_i32_1 = arith.constant 0 : i32
    return %c0_i32, %c0_i32_0 : i32, i32
  }
  func.func @transform_5(%arg0: i32) -> (i32, i32) {
    %c0_i32 = arith.constant 0 : i32
    %c0_i32_0 = arith.constant 0 : i32
    %c0_i32_1 = arith.constant 0 : i32
    return %c0_i32, %c0_i32_0 : i32, i32
  }
  func.func @transform_6(%arg0: i32) -> (i32, i32) {
    %c0_i32 = arith.constant 0 : i32
    %c0_i32_0 = arith.constant 0 : i32
    return %arg0, %c0_i32 : i32, i32
  }
}

</mosaic_0001>

<llo_original>
// kernel: forward.1
$region0: #{forward.1}
  #allocation0 [shape = 'u32[]', space=smem, size = 0x4, offset = 0x4, fixed_abs, tag = 'smem constant byte address 0x4 - core index']
  #allocation1 [shape = 'u32[144,128]{1,0:T(1,128)}', space=vmem, size = 0x12000, scoped, tag = 'internal scratch']
  %s0 = inlined_call_operand.vmem [shape: f32[128,32], index: 0, kind: input, shape index: {}]
  %s1 = inlined_call_operand.vmem [shape: f32[16,256], index: 1, kind: input, shape index: {}]
  %s2 = inlined_call_operand.vmem [shape: f32[32,128], index: 2, kind: input, shape index: {}]
  %s3 = inlined_call_operand.hbm [shape: f32[256,128], index: 3, kind: input, shape index: {}]
  %s4 = inlined_call_operand.vmem [shape: f32[1,128], index: 4, kind: input, shape index: {}]
  %s5 = inlined_call_operand.hbm [shape: f32[128,128], index: 5, kind: input, shape index: {}]
  %s6 = inlined_call_operand.vmem [shape: f32[128,128], index: 6, kind: output, shape index: {}]
  %s7 = sld [smem:[#allocation0]]
  $region42: #{forward.1} parent=0
    _
  %s9 = ssub.s32 1, %s7
  %s10 = scalar_select 0, %s9, %s7
  $region1: #{forward.1} parent=0
    #allocation2 [shape = 'u8[131072]{0}', space=vmem, size = 0x20000, scoped, tag = 'input window, operand 3, single buffered']
    #allocation3 [shape = 's32[1]{0}', space=sflag, size = 0x4, scoped, tag = 'scoped memory for forward.1']
    #allocation4 [shape = 'u8[65536]{0}', space=vmem, size = 0x10000, scoped, tag = 'input window, operand 5, single buffered']
    #allocation5 [shape = 's32[1]{0}', space=sflag, size = 0x4, scoped, tag = 'scoped memory for forward.1']
    %11 = vsyncpa [#allocation3], 0
    %12 = vsyncpa [#allocation5], 0
    // Predicated region
    $region2: #{forward.1} parent=1 // pred_check
      _
    $region3: #{forward.1} parent=1 // pred_check_branch
      %14 = sbr.rel (0) target = $region5
    $region4: #{forward.1} parent=1 // pred_region
      _
    $region5: #{forward.1} parent=1 // pred_fallthru
      _
    // Predicated region
    $region6: #{forward.1} parent=1 // pred_check
      _
    $region7: #{forward.1} parent=1 // pred_check_branch
      %16 = sbr.rel (0) target = $region9
    $region8: #{forward.1} parent=1 // pred_region
      _
    $region9: #{forward.1} parent=1 // pred_fallthru
      _
    // Predicated region
    $region10: #{forward.1} parent=1 // pred_check
      _
    $region11: #{forward.1} parent=1 // pred_check_branch
      %18 = sbr.rel (0) target = $region13
    $region12: #{forward.1} parent=1 // pred_region
      _
    $region13: #{forward.1} parent=1 // pred_fallthru
      _
    // Predicated region
    $region14: #{forward.1} parent=1 // pred_check
      _
    $region15: #{forward.1} parent=1 // pred_check_branch
      %20 = sbr.rel (0) target = $region17
    $region16: #{forward.1} parent=1 // pred_region
      %s22 = ssub.s32 4096, 4096
      %23 = vsyncadd [#allocation3], %s22
      %s24 = sshll.u32 [#allocation2], 4
      %s25 = int_to_ptr.vmem [resolvable:$true] %s24
      %30 = dma.hbm_to_vmem [thread:$0]  %s3, 4096, %s25, [#allocation3], 128, 128, 8
    $region17: #{forward.1} parent=1 // pred_fallthru
      _
    // Predicated region
    $region18: #{forward.1} parent=1 // pred_check
      _
    $region19: #{forward.1} parent=1 // pred_check_branch
      %32 = sbr.rel (0) target = $region21
    $region20: #{forward.1} parent=1 // pred_region
      _
    $region21: #{forward.1} parent=1 // pred_fallthru
      _
    // Predicated region
    $region22: #{forward.1} parent=1 // pred_check
      _
    $region23: #{forward.1} parent=1 // pred_check_branch
      %34 = sbr.rel (0) target = $region25
    $region24: #{forward.1} parent=1 // pred_region
      %s36 = ssub.s32 2048, 2048
      %37 = vsyncadd [#allocation5], %s36
      %s38 = sshll.u32 [#allocation4], 4
      %s39 = int_to_ptr.vmem [resolvable:$true] %s38
      %44 = dma.hbm_to_vmem [thread:$0]  %s5, 2048, %s39, [#allocation5], 128, 128, 8
    $region25: #{forward.1} parent=1 // pred_fallthru
      _
    // Predicated region
    $region26: #{forward.1} parent=1 // pred_check
      _
    $region27: #{forward.1} parent=1 // pred_check_branch
      %46 = sbr.rel (0) target = $region29
    $region28: #{forward.1} parent=1 // pred_region
      %47 = dma.done [#allocation3], 4096
    $region29: #{forward.1} parent=1 // pred_fallthru
      _
    // Predicated region
    $region30: #{forward.1} parent=1 // pred_check
      _
    $region31: #{forward.1} parent=1 // pred_check_branch
      %49 = sbr.rel (0) target = $region33
    $region32: #{forward.1} parent=1 // pred_region
      %50 = dma.done [#allocation5], 2048
    $region33: #{forward.1} parent=1 // pred_fallthru
      _
    %v51 = vld [vmem:[%s0] sm:$0xff]
    %v52 = vld [vmem:[%s0 + $0x8] sm:$0xff]
    %v53 = vld [vmem:[%s0 + $0x10] sm:$0xff]
    %v54 = vld [vmem:[%s0 + $0x18] sm:$0xff]
    %v55 = vld [vmem:[%s0 + $0x20] sm:$0xff]
    %v56 = vld [vmem:[%s0 + $0x28] sm:$0xff]
    %v57 = vld [vmem:[%s0 + $0x30] sm:$0xff]
    %v58 = vld [vmem:[%s0 + $0x38] sm:$0xff]
    %v59 = vld [vmem:[%s0 + $0x40] sm:$0xff]
    %v60 = vld [vmem:[%s0 + $0x48] sm:$0xff]
    %v61 = vld [vmem:[%s0 + $0x50] sm:$0xff]
    %v62 = vld [vmem:[%s0 + $0x58] sm:$0xff]
    %v63 = vld [vmem:[%s0 + $0x60] sm:$0xff]
    %v64 = vld [vmem:[%s0 + $0x68] sm:$0xff]
    %v65 = vld [vmem:[%s0 + $0x70] sm:$0xff]
    %v66 = vld [vmem:[%s0 + $0x78] sm:$0xff]
    %v67 = vld [vmem:[%s2] sm:$0xff]
    %v68 = vld [vmem:[%s2 + $0x8] sm:$0xff]
    %v69 = vld [vmem:[%s2 + $0x10] sm:$0xff]
    %v70 = vld [vmem:[%s2 + $0x18] sm:$0xff]
    %vm71 = vcmask 261120
    %v73 = vsel %vm71, %v51, 0
    %v76 = vsel %vm71, %v52, 0
    %v79 = vsel %vm71, %v53, 0
    %v82 = vsel %vm71, %v54, 0
    %v85 = vsel %vm71, %v55, 0
    %v88 = vsel %vm71, %v56, 0
    %v91 = vsel %vm71, %v57, 0
    %v94 = vsel %vm71, %v58, 0
    %v97 = vsel %vm71, %v59, 0
    %v100 = vsel %vm71, %v60, 0
    %v103 = vsel %vm71, %v61, 0
    %v106 = vsel %vm71, %v62, 0
    %v109 = vsel %vm71, %v63, 0
    %v112 = vsel %vm71, %v64, 0
    %v115 = vsel %vm71, %v65, 0
    %v118 = vsel %vm71, %v66, 0
    %120 = vmatprep.subr.mxu0 0.0
    %121 = vmatpush1.msra.mxu0 %v67
    %122 = vmatprep.subr.mxu0 0.0
    %123 = vmatpush1.msra.mxu0 %v68
    %124 = vmatprep.subr.mxu0 0.0
    %125 = vmatpush1.msra.mxu0 %v69
    %126 = vmatprep.subr.mxu0 0.0
    %127 = vmatpush1.msra.mxu0 %v70
    %128 = vmatprep.subr.mxu0 0.0
    %129 = vmatpush1.msra.mxu0 0.0
    %130 = vmatprep.subr.mxu0 0.0
    %131 = vmatpush1.msra.mxu0 0.0
    %132 = vmatprep.subr.mxu0 0.0
    %133 = vmatpush1.msra.mxu0 0.0
    %134 = vmatprep.subr.mxu0 0.0
    %135 = vmatpush1.msra.mxu0 0.0
    %136 = vmatprep.subr.mxu0 0.0
    %137 = vmatpush1.msra.mxu0 0.0
    %138 = vmatprep.subr.mxu0 0.0
    %139 = vmatpush1.msra.mxu0 0.0
    %140 = vmatprep.subr.mxu0 0.0
    %141 = vmatpush1.msra.mxu0 0.0
    %142 = vmatprep.subr.mxu0 0.0
    %143 = vmatpush1.msra.mxu0 0.0
    %144 = vmatprep.subr.mxu0 0.0
    %145 = vmatpush1.msra.mxu0 0.0
    %146 = vmatprep.subr.mxu0 0.0
    %147 = vmatpush1.msra.mxu0 0.0
    %148 = vmatprep.subr.mxu0 0.0
    %149 = vmatpush1.msra.mxu0 0.0
    %150 = vmatprep.subr.mxu0 0.0
    %151 = vmatpush1.msra.mxu0 0.0
    %152 = vmatprep.subr.mxu0 0.0
    %153 = vmatpush1.msra.mxu0 0.0
    %154 = vmatprep.subr.mxu0 0.0
    %155 = vmatpush1.msra.mxu0 0.0
    %156 = vmatprep.subr.mxu0 0.0
    %157 = vmatpush1.msra.mxu0 0.0
    %158 = vmatprep.subr.mxu0 0.0
    %159 = vmatpush1.msra.mxu0 0.0
    %160 = vmatprep.subr.mxu0 0.0
    %161 = vmatpush1.msra.mxu0 0.0
    %162 = vmatprep.subr.mxu0 0.0
    %163 = vmatpush1.msra.mxu0 0.0
    %164 = vmatprep.subr.mxu0 0.0
    %165 = vmatpush1.msra.mxu0 0.0
    %166 = vmatprep.subr.mxu0 0.0
    %167 = vmatpush1.msra.mxu0 0.0
    %168 = vmatprep.subr.mxu0 0.0
    %169 = vmatpush1.msra.mxu0 0.0
    %170 = vmatprep.subr.mxu0 0.0
    %171 = vmatpush1.msra.mxu0 0.0
    %172 = vmatprep.subr.mxu0 0.0
    %173 = vmatpush1.msra.mxu0 0.0
    %174 = vmatprep.subr.mxu0 0.0
    %175 = vmatpush1.msra.mxu0 0.0
    %176 = vmatprep.subr.mxu0 0.0
    %177 = vmatpush1.msra.mxu0 0.0
    %178 = vmatprep.subr.mxu0 0.0
    %179 = vmatpush1.msra.mxu0 0.0
    %180 = vmatprep.subr.mxu0 0.0
    %181 = vmatpush1.msra.mxu0 0.0
    %182 = vmatprep.subr.mxu0 0.0
    %183 = vmatpush1.msra.mxu0 0.0
    %184 = vmatprep.mubr.f32.mxu0 0.0
    %185 = vmatmul.mubr.f32.gmra.mrb[0].mxu0 %v73
    %v186 = vpop.f32.mrb[0].mxu0
    %v187 = vadd.f32 0.0, %v186
    %v188 = vpop.f32.mrb[0].mxu0
    %189 = vmatprep.mubr.f32.mxu0 0.0
    %190 = vmatmul.mubr.f32.gmra.mrb[0].mxu0 %v76
    %v191 = vpop.f32.mrb[0].mxu0
    %v192 = vadd.f32 0.0, %v191
    %v193 = vpop.f32.mrb[0].mxu0
    %194 = vmatprep.mubr.f32.mxu0 0.0
    %195 = vmatmul.mubr.f32.gmra.mrb[0].mxu0 %v79
    %v196 = vpop.f32.mrb[0].mxu0
    %v197 = vadd.f32 0.0, %v196
    %v198 = vpop.f32.mrb[0].mxu0
    %199 = vmatprep.mubr.f32.mxu0 0.0
    %200 = vmatmul.mubr.f32.gmra.mrb[0].mxu0 %v82
    %v201 = vpop.f32.mrb[0].mxu0
    %v202 = vadd.f32 0.0, %v201
    %v203 = vpop.f32.mrb[0].mxu0
    %204 = vmatprep.mubr.f32.mxu0 0.0
    %205 = vmatmul.mubr.f32.gmra.mrb[0].mxu0 %v85
    %v206 = vpop.f32.mrb[0].mxu0
    %v207 = vadd.f32 0.0, %v206
    %v208 = vpop.f32.mrb[0].mxu0
    %209 = vmatprep.mubr.f32.mxu0 0.0
    %210 = vmatmul.mubr.f32.gmra.mrb[0].mxu0 %v88
    %v211 = vpop.f32.mrb[0].mxu0
    %v212 = vadd.f32 0.0, %v211
    %v213 = vpop.f32.mrb[0].mxu0
    %214 = vmatprep.mubr.f32.mxu0 0.0
    %215 = vmatmul.mubr.f32.gmra.mrb[0].mxu0 %v91
    %v216 = vpop.f32.mrb[0].mxu0
    %v217 = vadd.f32 0.0, %v216
    %v218 = vpop.f32.mrb[0].mxu0
    %219 = vmatprep.mubr.f32.mxu0 0.0
    %220 = vmatmul.mubr.f32.gmra.mrb[0].mxu0 %v94
    %v221 = vpop.f32.mrb[0].mxu0
    %v222 = vadd.f32 0.0, %v221
    %v223 = vpop.f32.mrb[0].mxu0
    %224 = vmatprep.mubr.f32.mxu0 0.0
    %225 = vmatmul.mubr.f32.gmra.mrb[0].mxu0 %v97
    %v226 = vpop.f32.mrb[0].mxu0
    %v227 = vadd.f32 0.0, %v226
    %v228 = vpop.f32.mrb[0].mxu0
    %229 = vmatprep.mubr.f32.mxu0 0.0
    %230 = vmatmul.mubr.f32.gmra.mrb[0].mxu0 %v100
    %v231 = vpop.f32.mrb[0].mxu0
    %v232 = vadd.f32 0.0, %v231
    %v233 = vpop.f32.mrb[0].mxu0
    %234 = vmatprep.mubr.f32.mxu0 0.0
    %235 = vmatmul.mubr.f32.gmra.mrb[0].mxu0 %v103
    %v236 = vpop.f32.mrb[0].mxu0
    %v237 = vadd.f32 0.0, %v236
    %v238 = vpop.f32.mrb[0].mxu0
    %239 = vmatprep.mubr.f32.mxu0 0.0
    %240 = vmatmul.mubr.f32.gmra.mrb[0].mxu0 %v106
    %v241 = vpop.f32.mrb[0].mxu0
    %v242 = vadd.f32 0.0, %v241
    %v243 = vpop.f32.mrb[0].mxu0
    %244 = vmatprep.mubr.f32.mxu0 0.0
    %245 = vmatmul.mubr.f32.gmra.mrb[0].mxu0 %v109
    %v246 = vpop.f32.mrb[0].mxu0
    %v247 = vadd.f32 0.0, %v246
    %v248 = vpop.f32.mrb[0].mxu0
    %249 = vmatprep.mubr.f32.mxu0 0.0
    %250 = vmatmul.mubr.f32.gmra.mrb[0].mxu0 %v112
    %v251 = vpop.f32.mrb[0].mxu0
    %v252 = vadd.f32 0.0, %v251
    %v253 = vpop.f32.mrb[0].mxu0
    %254 = vmatprep.mubr.f32.mxu0 0.0
    %255 = vmatmul.mubr.f32.gmra.mrb[0].mxu0 %v115
    %v256 = vpop.f32.mrb[0].mxu0
    %v257 = vadd.f32 0.0, %v256
    %v258 = vpop.f32.mrb[0].mxu0
    %259 = vmatprep.mubr.f32.mxu0 0.0
    %260 = vmatmul.mubr.f32.gmra.mrb[0].mxu0 %v118
    %v261 = vpop.f32.mrb[0].mxu0
    %v262 = vadd.f32 0.0, %v261
    %v263 = vpop.f32.mrb[0].mxu0
    %264 = vdwg.mxu0
    %v265 = vld [vmem:[%s1] sm:$0xff]
    %v266 = vld [vmem:[%s1 + $0x8] sm:$0xff]
    %v267 = vld [vmem:[%s1 + $0x10] sm:$0xff]
    %v268 = vld [vmem:[%s1 + $0x18] sm:$0xff]
    %v269 = vld [vmem:[#allocation2] sm:$0xff]
    %v270 = vld [vmem:[#allocation2 + $0x8] sm:$0xff]
    %v271 = vld [vmem:[#allocation2 + $0x10] sm:$0xff]
    %v272 = vld [vmem:[#allocation2 + $0x18] sm:$0xff]
    %v273 = vld [vmem:[#allocation2 + $0x20] sm:$0xff]
    %v274 = vld [vmem:[#allocation2 + $0x28] sm:$0xff]
    %v275 = vld [vmem:[#allocation2 + $0x30] sm:$0xff]
    %v276 = vld [vmem:[#allocation2 + $0x38] sm:$0xff]
    %v277 = vld [vmem:[#allocation2 + $0x40] sm:$0xff]
    %v278 = vld [vmem:[#allocation2 + $0x48] sm:$0xff]
    %v279 = vld [vmem:[#allocation2 + $0x50] sm:$0xff]
    %v280 = vld [vmem:[#allocation2 + $0x58] sm:$0xff]
    %v281 = vld [vmem:[#allocation2 + $0x60] sm:$0xff]
    %v282 = vld [vmem:[#allocation2 + $0x68] sm:$0xff]
    %v283 = vld [vmem:[#allocation2 + $0x70] sm:$0xff]
    %v284 = vld [vmem:[#allocation2 + $0x78] sm:$0xff]
    %v285 = vld [vmem:[#allocation2 + $0x80] sm:$0xff]
    %v286 = vld [vmem:[#allocation2 + $0x88] sm:$0xff]
    %v287 = vld [vmem:[#allocation2 + $0x90] sm:$0xff]
    %v288 = vld [vmem:[#allocation2 + $0x98] sm:$0xff]
    %v289 = vld [vmem:[#allocation2 + $0xa0] sm:$0xff]
    %v290 = vld [vmem:[#allocation2 + $0xa8] sm:$0xff]
    %v291 = vld [vmem:[#allocation2 + $0xb0] sm:$0xff]
    %v292 = vld [vmem:[#allocation2 + $0xb8] sm:$0xff]
    %v293 = vld [vmem:[#allocation2 + $0xc0] sm:$0xff]
    %v294 = vld [vmem:[#allocation2 + $0xc8] sm:$0xff]
    %v295 = vld [vmem:[#allocation2 + $0xd0] sm:$0xff]
    %v296 = vld [vmem:[#allocation2 + $0xd8] sm:$0xff]
    %v297 = vld [vmem:[#allocation2 + $0xe0] sm:$0xff]
    %v298 = vld [vmem:[#allocation2 + $0xe8] sm:$0xff]
    %v299 = vld [vmem:[#allocation2 + $0xf0] sm:$0xff]
    %v300 = vld [vmem:[#allocation2 + $0xf8] sm:$0xff]
    %v301 = vld [vmem:[%s4] sm:$0x1]
    %v303 = vlaneseq
    %v304 = vshrl.u32 %v303, 7
    %v305 = vsub.s32 0, %v304
    %v306 = vrot.slane %v301, %v305
    %308 = vmatprep.subr.mxu0 0.0
    %309 = vmatpush1.msra.mxu0 %v269
    %310 = vmatprep.subr.mxu0 0.0
    %311 = vmatpush1.msra.mxu0 %v270
    %312 = vmatprep.subr.mxu0 0.0
    %313 = vmatpush1.msra.mxu0 %v271
    %314 = vmatprep.subr.mxu0 0.0
    %315 = vmatpush1.msra.mxu0 %v272
    %316 = vmatprep.subr.mxu0 0.0
    %317 = vmatpush1.msra.mxu0 %v273
    %318 = vmatprep.subr.mxu0 0.0
    %319 = vmatpush1.msra.mxu0 %v274
    %320 = vmatprep.subr.mxu0 0.0
    %321 = vmatpush1.msra.mxu0 %v275
    %322 = vmatprep.subr.mxu0 0.0
    %323 = vmatpush1.msra.mxu0 %v276
    %324 = vmatprep.subr.mxu0 0.0
    %325 = vmatpush1.msra.mxu0 %v277
    %326 = vmatprep.subr.mxu0 0.0
    %327 = vmatpush1.msra.mxu0 %v278
    %328 = vmatprep.subr.mxu0 0.0
    %329 = vmatpush1.msra.mxu0 %v279
    %330 = vmatprep.subr.mxu0 0.0
    %331 = vmatpush1.msra.mxu0 %v280
    %332 = vmatprep.subr.mxu0 0.0
    %333 = vmatpush1.msra.mxu0 %v281
    %334 = vmatprep.subr.mxu0 0.0
    %335 = vmatpush1.msra.mxu0 %v282
    %336 = vmatprep.subr.mxu0 0.0
    %337 = vmatpush1.msra.mxu0 %v283
    %338 = vmatprep.subr.mxu0 0.0
    %339 = vmatpush1.msra.mxu0 %v284
    %340 = vmatprep.subr.mxu0 0.0
    %341 = vmatpush1.msra.mxu0 %v285
    %342 = vmatprep.subr.mxu0 0.0
    %343 = vmatpush1.msra.mxu0 %v286
    %344 = vmatprep.subr.mxu0 0.0
    %345 = vmatpush1.msra.mxu0 %v287
    %346 = vmatprep.subr.mxu0 0.0
    %347 = vmatpush1.msra.mxu0 %v288
    %348 = vmatprep.subr.mxu0 0.0
    %349 = vmatpush1.msra.mxu0 %v289
    %350 = vmatprep.subr.mxu0 0.0
    %351 = vmatpush1.msra.mxu0 %v290
    %352 = vmatprep.subr.mxu0 0.0
    %353 = vmatpush1.msra.mxu0 %v291
    %354 = vmatprep.subr.mxu0 0.0
    %355 = vmatpush1.msra.mxu0 %v292
    %356 = vmatprep.subr.mxu0 0.0
    %357 = vmatpush1.msra.mxu0 %v293
    %358 = vmatprep.subr.mxu0 0.0
    %359 = vmatpush1.msra.mxu0 %v294
    %360 = vmatprep.subr.mxu0 0.0
    %361 = vmatpush1.msra.mxu0 %v295
    %362 = vmatprep.subr.mxu0 0.0
    %363 = vmatpush1.msra.mxu0 %v296
    %364 = vmatprep.subr.mxu0 0.0
    %365 = vmatpush1.msra.mxu0 %v297
    %366 = vmatprep.subr.mxu0 0.0
    %367 = vmatpush1.msra.mxu0 %v298
    %368 = vmatprep.subr.mxu0 0.0
    %369 = vmatpush1.msra.mxu0 %v299
    %370 = vmatprep.subr.mxu0 0.0
    %371 = vmatpush1.msra.mxu0 %v300
    %372 = vmatprep.mubr.f32.mxu0 %v266
    %373 = vmatmul.mubr.f32.gmra.mrb[0].mxu0 %v265
    %v374 = vpop.f32.mrb[0].mxu0
    %v375 = vadd.f32 %v306, %v374
    %v376 = vpop.f32.mrb[0].mxu0
    %377 = vmatprep.mubr.f32.mxu0 %v268
    %378 = vmatmul.mubr.f32.gmra.mrb[0].mxu0 %v267
    %v379 = vpop.f32.mrb[0].mxu0
    %v380 = vadd.f32 %v306, %v379
    %v381 = vpop.f32.mrb[0].mxu0
    %382 = vdwg.mxu0
    %v385 = vcombine.high %v375, %v375
    %v387 = vunpack.c.l.s4 1966171168
    %v388 = vunpack.c.0.s8 %v387
    %v389 = vlaneseq
    %v390 = vshrl.u32 %v389, 7
    %v391 = vsub.s32 %v388, %v390
    %v392 = vrot.slane %v375, %v391
    %v394 = vunpack.c.l.s4 1966171168
    %v395 = vunpack.c.0.s8 %v394
    %v396 = vlaneseq
    %v397 = vshrl.u32 %v396, 7
    %v398 = vsub.s32 %v395, %v397
    %v399 = vrot.slane %v385, %v398
    %v400 = vcombine.high %v392, %v392
    %v401 = vcombine.high %v399, %v399
    %v403 = vunpack.c.l.s4 1966171168
    %v404 = vunpack.c.0.s8 %v403
    %v405 = vlaneseq
    %v406 = vshrl.u32 %v405, 7
    %v407 = vsub.s32 %v404, %v406
    %v408 = vrot.slane %v392, %v407
    %v410 = vunpack.c.l.s4 1966171168
    %v411 = vunpack.c.0.s8 %v410
    %v412 = vlaneseq
    %v413 = vshrl.u32 %v412, 7
    %v414 = vsub.s32 %v411, %v413
    %v415 = vrot.slane %v399, %v414
    %v417 = vunpack.c.l.s4 1966171168
    %v418 = vunpack.c.0.s8 %v417
    %v419 = vlaneseq
    %v420 = vshrl.u32 %v419, 7
    %v421 = vsub.s32 %v418, %v420
    %v422 = vrot.slane %v400, %v421
    %v424 = vunpack.c.l.s4 1966171168
    %v425 = vunpack.c.0.s8 %v424
    %v426 = vlaneseq
    %v427 = vshrl.u32 %v426, 7
    %v428 = vsub.s32 %v425, %v427
    %v429 = vrot.slane %v401, %v428
    %v430 = vcombine.high %v408, %v408
    %v431 = vcombine.high %v415, %v415
    %v432 = vcombine.high %v422, %v422
    %v433 = vcombine.high %v429, %v429
    %v434 = vcombine.high %v380, %v380
    %v436 = vunpack.c.l.s4 1966171168
    %v437 = vunpack.c.0.s8 %v436
    %v438 = vlaneseq
    %v439 = vshrl.u32 %v438, 7
    %v440 = vsub.s32 %v437, %v439
    %v441 = vrot.slane %v380, %v440
    %v443 = vunpack.c.l.s4 1966171168
    %v444 = vunpack.c.0.s8 %v443
    %v445 = vlaneseq
    %v446 = vshrl.u32 %v445, 7
    %v447 = vsub.s32 %v444, %v446
    %v448 = vrot.slane %v434, %v447
    %v449 = vcombine.high %v441, %v441
    %v450 = vcombine.high %v448, %v448
    %v452 = vunpack.c.l.s4 1966171168
    %v453 = vunpack.c.0.s8 %v452
    %v454 = vlaneseq
    %v455 = vshrl.u32 %v454, 7
    %v456 = vsub.s32 %v453, %v455
    %v457 = vrot.slane %v441, %v456
    %v459 = vunpack.c.l.s4 1966171168
    %v460 = vunpack.c.0.s8 %v459
    %v461 = vlaneseq
    %v462 = vshrl.u32 %v461, 7
    %v463 = vsub.s32 %v460, %v462
    %v464 = vrot.slane %v448, %v463
    %v466 = vunpack.c.l.s4 1966171168
    %v467 = vunpack.c.0.s8 %v466
    %v468 = vlaneseq
    %v469 = vshrl.u32 %v468, 7
    %v470 = vsub.s32 %v467, %v469
    %v471 = vrot.slane %v449, %v470
    %v473 = vunpack.c.l.s4 1966171168
    %v474 = vunpack.c.0.s8 %v473
    %v475 = vlaneseq
    %v476 = vshrl.u32 %v475, 7
    %v477 = vsub.s32 %v474, %v476
    %v478 = vrot.slane %v450, %v477
    %v479 = vcombine.high %v457, %v457
    %v480 = vcombine.high %v464, %v464
    %v481 = vcombine.high %v471, %v471
    %v482 = vcombine.high %v478, %v478
    %v483 = vlaneseq
    %v484 = vshrl.u32 %v483, 7
    %v485 = vsub.s32 0, %v484
    %v486 = vrot.slane %v408, %v485
    %v487 = vlaneseq
    %v488 = vshrl.u32 %v487, 7
    %v489 = vsub.s32 0, %v488
    %v490 = vrot.slane %v422, %v489
    %v491 = vlaneseq
    %v492 = vshrl.u32 %v491, 7
    %v493 = vsub.s32 0, %v492
    %v494 = vrot.slane %v430, %v493
    %v495 = vlaneseq
    %v496 = vshrl.u32 %v495, 7
    %v497 = vsub.s32 0, %v496
    %v498 = vrot.slane %v432, %v497
    %v499 = vlaneseq
    %v500 = vshrl.u32 %v499, 7
    %v501 = vsub.s32 0, %v500
    %v502 = vrot.slane %v415, %v501
    %v503 = vlaneseq
    %v504 = vshrl.u32 %v503, 7
    %v505 = vsub.s32 0, %v504
    %v506 = vrot.slane %v429, %v505
    %v507 = vlaneseq
    %v508 = vshrl.u32 %v507, 7
    %v509 = vsub.s32 0, %v508
    %v510 = vrot.slane %v431, %v509
    %v511 = vlaneseq
    %v512 = vshrl.u32 %v511, 7
    %v513 = vsub.s32 0, %v512
    %v514 = vrot.slane %v433, %v513
    %v515 = vlaneseq
    %v516 = vshrl.u32 %v515, 7
    %v517 = vsub.s32 0, %v516
    %v518 = vrot.slane %v457, %v517
    %v519 = vlaneseq
    %v520 = vshrl.u32 %v519, 7
    %v521 = vsub.s32 0, %v520
    %v522 = vrot.slane %v471, %v521
    %v523 = vlaneseq
    %v524 = vshrl.u32 %v523, 7
    %v525 = vsub.s32 0, %v524
    %v526 = vrot.slane %v479, %v525
    %v527 = vlaneseq
    %v528 = vshrl.u32 %v527, 7
    %v529 = vsub.s32 0, %v528
    %v530 = vrot.slane %v481, %v529
    %v531 = vlaneseq
    %v532 = vshrl.u32 %v531, 7
    %v533 = vsub.s32 0, %v532
    %v534 = vrot.slane %v464, %v533
    %v535 = vlaneseq
    %v536 = vshrl.u32 %v535, 7
    %v537 = vsub.s32 0, %v536
    %v538 = vrot.slane %v478, %v537
    %v539 = vlaneseq
    %v540 = vshrl.u32 %v539, 7
    %v541 = vsub.s32 0, %v540
    %v542 = vrot.slane %v480, %v541
    %v543 = vlaneseq
    %v544 = vshrl.u32 %v543, 7
    %v545 = vsub.s32 0, %v544
    %v546 = vrot.slane %v482, %v545
    %v563 = vadd.f32 %v187, %v486
    %v564 = vadd.f32 %v192, %v490
    %v565 = vadd.f32 %v197, %v494
    %v566 = vadd.f32 %v202, %v498
    %v567 = vadd.f32 %v207, %v502
    %v568 = vadd.f32 %v212, %v506
    %v569 = vadd.f32 %v217, %v510
    %v570 = vadd.f32 %v222, %v514
    %v571 = vadd.f32 %v227, %v518
    %v572 = vadd.f32 %v232, %v522
    %v573 = vadd.f32 %v237, %v526
    %v574 = vadd.f32 %v242, %v530
    %v575 = vadd.f32 %v247, %v534
    %v576 = vadd.f32 %v252, %v538
    %v577 = vadd.f32 %v257, %v542
    %v578 = vadd.f32 %v262, %v546
    %v579 = vtanh.pop %v563
    %v580 = vtanh.pop %v564
    %v581 = vtanh.pop %v565
    %v582 = vtanh.pop %v566
    %v583 = vtanh.pop %v567
    %v584 = vtanh.pop %v568
    %v585 = vtanh.pop %v569
    %v586 = vtanh.pop %v570
    %v587 = vtanh.pop %v571
    %v588 = vtanh.pop %v572
    %v589 = vtanh.pop %v573
    %v590 = vtanh.pop %v574
    %v591 = vtanh.pop %v575
    %v592 = vtanh.pop %v576
    %v593 = vtanh.pop %v577
    %v594 = vtanh.pop %v578
    %v595 = vld [vmem:[#allocation4] sm:$0xff]
    %v596 = vld [vmem:[#allocation4 + $0x8] sm:$0xff]
    %v597 = vld [vmem:[#allocation4 + $0x10] sm:$0xff]
    %v598 = vld [vmem:[#allocation4 + $0x18] sm:$0xff]
    %v599 = vld [vmem:[#allocation4 + $0x20] sm:$0xff]
    %v600 = vld [vmem:[#allocation4 + $0x28] sm:$0xff]
    %v601 = vld [vmem:[#allocation4 + $0x30] sm:$0xff]
    %v602 = vld [vmem:[#allocation4 + $0x38] sm:$0xff]
    %v603 = vld [vmem:[#allocation4 + $0x40] sm:$0xff]
    %v604 = vld [vmem:[#allocation4 + $0x48] sm:$0xff]
    %v605 = vld [vmem:[#allocation4 + $0x50] sm:$0xff]
    %v606 = vld [vmem:[#allocation4 + $0x58] sm:$0xff]
    %v607 = vld [vmem:[#allocation4 + $0x60] sm:$0xff]
    %v608 = vld [vmem:[#allocation4 + $0x68] sm:$0xff]
    %v609 = vld [vmem:[#allocation4 + $0x70] sm:$0xff]
    %v610 = vld [vmem:[#allocation4 + $0x78] sm:$0xff]
    %611 = vmatprep.subr.mxu0 0.0
    %612 = vmatpush1.msra.mxu0 %v595
    %613 = vmatprep.subr.mxu0 0.0
    %614 = vmatpush1.msra.mxu0 %v596
    %615 = vmatprep.subr.mxu0 0.0
    %616 = vmatpush1.msra.mxu0 %v597
    %617 = vmatprep.subr.mxu0 0.0
    %618 = vmatpush1.msra.mxu0 %v598
    %619 = vmatprep.subr.mxu0 0.0
    %620 = vmatpush1.msra.mxu0 %v599
    %621 = vmatprep.subr.mxu0 0.0
    %622 = vmatpush1.msra.mxu0 %v600
    %623 = vmatprep.subr.mxu0 0.0
    %624 = vmatpush1.msra.mxu0 %v601
    %625 = vmatprep.subr.mxu0 0.0
    %626 = vmatpush1.msra.mxu0 %v602
    %627 = vmatprep.subr.mxu0 0.0
    %628 = vmatpush1.msra.mxu0 %v603
    %629 = vmatprep.subr.mxu0 0.0
    %630 = vmatpush1.msra.mxu0 %v604
    %631 = vmatprep.subr.mxu0 0.0
    %632 = vmatpush1.msra.mxu0 %v605
    %633 = vmatprep.subr.mxu0 0.0
    %634 = vmatpush1.msra.mxu0 %v606
    %635 = vmatprep.subr.mxu0 0.0
    %636 = vmatpush1.msra.mxu0 %v607
    %637 = vmatprep.subr.mxu0 0.0
    %638 = vmatpush1.msra.mxu0 %v608
    %639 = vmatprep.subr.mxu0 0.0
    %640 = vmatpush1.msra.mxu0 %v609
    %641 = vmatprep.subr.mxu0 0.0
    %642 = vmatpush1.msra.mxu0 %v610
    %643 = vmatprep.subr.mxu0 0.0
    %644 = vmatpush1.msra.mxu0 0.0
    %645 = vmatprep.subr.mxu0 0.0
    %646 = vmatpush1.msra.mxu0 0.0
    %647 = vmatprep.subr.mxu0 0.0
    %648 = vmatpush1.msra.mxu0 0.0
    %649 = vmatprep.subr.mxu0 0.0
    %650 = vmatpush1.msra.mxu0 0.0
    %651 = vmatprep.subr.mxu0 0.0
    %652 = vmatpush1.msra.mxu0 0.0
    %653 = vmatprep.subr.mxu0 0.0
    %654 = vmatpush1.msra.mxu0 0.0
    %655 = vmatprep.subr.mxu0 0.0
    %656 = vmatpush1.msra.mxu0 0.0
    %657 = vmatprep.subr.mxu0 0.0
    %658 = vmatpush1.msra.mxu0 0.0
    %659 = vmatprep.subr.mxu0 0.0
    %660 = vmatpush1.msra.mxu0 0.0
    %661 = vmatprep.subr.mxu0 0.0
    %662 = vmatpush1.msra.mxu0 0.0
    %663 = vmatprep.subr.mxu0 0.0
    %664 = vmatpush1.msra.mxu0 0.0
    %665 = vmatprep.subr.mxu0 0.0
    %666 = vmatpush1.msra.mxu0 0.0
    %667 = vmatprep.subr.mxu0 0.0
    %668 = vmatpush1.msra.mxu0 0.0
    %669 = vmatprep.subr.mxu0 0.0
    %670 = vmatpush1.msra.mxu0 0.0
    %671 = vmatprep.subr.mxu0 0.0
    %672 = vmatpush1.msra.mxu0 0.0
    %673 = vmatprep.subr.mxu0 0.0
    %674 = vmatpush1.msra.mxu0 0.0
    %675 = vmatprep.mubr.f32.mxu0 0.0
    %676 = vmatmul.mubr.f32.gmra.mrb[0].mxu0 %v579
    %v677 = vpop.f32.mrb[0].mxu0
    %v678 = vadd.f32 0.0, %v677
    %v679 = vpop.f32.mrb[0].mxu0
    %680 = vmatprep.mubr.f32.mxu0 0.0
    %681 = vmatmul.mubr.f32.gmra.mrb[0].mxu0 %v580
    %v682 = vpop.f32.mrb[0].mxu0
    %v683 = vadd.f32 0.0, %v682
    %v684 = vpop.f32.mrb[0].mxu0
    %685 = vmatprep.mubr.f32.mxu0 0.0
    %686 = vmatmul.mubr.f32.gmra.mrb[0].mxu0 %v581
    %v687 = vpop.f32.mrb[0].mxu0
    %v688 = vadd.f32 0.0, %v687
    %v689 = vpop.f32.mrb[0].mxu0
    %690 = vmatprep.mubr.f32.mxu0 0.0
    %691 = vmatmul.mubr.f32.gmra.mrb[0].mxu0 %v582
    %v692 = vpop.f32.mrb[0].mxu0
    %v693 = vadd.f32 0.0, %v692
    %v694 = vpop.f32.mrb[0].mxu0
    %695 = vmatprep.mubr.f32.mxu0 0.0
    %696 = vmatmul.mubr.f32.gmra.mrb[0].mxu0 %v583
    %v697 = vpop.f32.mrb[0].mxu0
    %v698 = vadd.f32 0.0, %v697
    %v699 = vpop.f32.mrb[0].mxu0
    %700 = vmatprep.mubr.f32.mxu0 0.0
    %701 = vmatmul.mubr.f32.gmra.mrb[0].mxu0 %v584
    %v702 = vpop.f32.mrb[0].mxu0
    %v703 = vadd.f32 0.0, %v702
    %v704 = vpop.f32.mrb[0].mxu0
    %705 = vmatprep.mubr.f32.mxu0 0.0
    %706 = vmatmul.mubr.f32.gmra.mrb[0].mxu0 %v585
    %v707 = vpop.f32.mrb[0].mxu0
    %v708 = vadd.f32 0.0, %v707
    %v709 = vpop.f32.mrb[0].mxu0
    %710 = vmatprep.mubr.f32.mxu0 0.0
    %711 = vmatmul.mubr.f32.gmra.mrb[0].mxu0 %v586
    %v712 = vpop.f32.mrb[0].mxu0
    %v713 = vadd.f32 0.0, %v712
    %v714 = vpop.f32.mrb[0].mxu0
    %715 = vmatprep.mubr.f32.mxu0 0.0
    %716 = vmatmul.mubr.f32.gmra.mrb[0].mxu0 %v587
    %v717 = vpop.f32.mrb[0].mxu0
    %v718 = vadd.f32 0.0, %v717
    %v719 = vpop.f32.mrb[0].mxu0
    %720 = vmatprep.mubr.f32.mxu0 0.0
    %721 = vmatmul.mubr.f32.gmra.mrb[0].mxu0 %v588
    %v722 = vpop.f32.mrb[0].mxu0
    %v723 = vadd.f32 0.0, %v722
    %v724 = vpop.f32.mrb[0].mxu0
    %725 = vmatprep.mubr.f32.mxu0 0.0
    %726 = vmatmul.mubr.f32.gmra.mrb[0].mxu0 %v589
    %v727 = vpop.f32.mrb[0].mxu0
    %v728 = vadd.f32 0.0, %v727
    %v729 = vpop.f32.mrb[0].mxu0
    %730 = vmatprep.mubr.f32.mxu0 0.0
    %731 = vmatmul.mubr.f32.gmra.mrb[0].mxu0 %v590
    %v732 = vpop.f32.mrb[0].mxu0
    %v733 = vadd.f32 0.0, %v732
    %v734 = vpop.f32.mrb[0].mxu0
    %735 = vmatprep.mubr.f32.mxu0 0.0
    %736 = vmatmul.mubr.f32.gmra.mrb[0].mxu0 %v591
    %v737 = vpop.f32.mrb[0].mxu0
    %v738 = vadd.f32 0.0, %v737
    %v739 = vpop.f32.mrb[0].mxu0
    %740 = vmatprep.mubr.f32.mxu0 0.0
    %741 = vmatmul.mubr.f32.gmra.mrb[0].mxu0 %v592
    %v742 = vpop.f32.mrb[0].mxu0
    %v743 = vadd.f32 0.0, %v742
    %v744 = vpop.f32.mrb[0].mxu0
    %745 = vmatprep.mubr.f32.mxu0 0.0
    %746 = vmatmul.mubr.f32.gmra.mrb[0].mxu0 %v593
    %v747 = vpop.f32.mrb[0].mxu0
    %v748 = vadd.f32 0.0, %v747
    %v749 = vpop.f32.mrb[0].mxu0
    %750 = vmatprep.mubr.f32.mxu0 0.0
    %751 = vmatmul.mubr.f32.gmra.mrb[0].mxu0 %v594
    %v752 = vpop.f32.mrb[0].mxu0
    %v753 = vadd.f32 0.0, %v752
    %v754 = vpop.f32.mrb[0].mxu0
    %755 = vdwg.mxu0
    %756 = vst [vmem:[%s6] sm:$0xff] %v678
    %757 = vst [vmem:[%s6 + $0x8] sm:$0xff] %v683
    %758 = vst [vmem:[%s6 + $0x10] sm:$0xff] %v688
    %759 = vst [vmem:[%s6 + $0x18] sm:$0xff] %v693
    %760 = vst [vmem:[%s6 + $0x20] sm:$0xff] %v698
    %761 = vst [vmem:[%s6 + $0x28] sm:$0xff] %v703
    %762 = vst [vmem:[%s6 + $0x30] sm:$0xff] %v708
    %763 = vst [vmem:[%s6 + $0x38] sm:$0xff] %v713
    %764 = vst [vmem:[%s6 + $0x40] sm:$0xff] %v718
    %765 = vst [vmem:[%s6 + $0x48] sm:$0xff] %v723
    %766 = vst [vmem:[%s6 + $0x50] sm:$0xff] %v728
    %767 = vst [vmem:[%s6 + $0x58] sm:$0xff] %v733
    %768 = vst [vmem:[%s6 + $0x60] sm:$0xff] %v738
    %769 = vst [vmem:[%s6 + $0x68] sm:$0xff] %v743
    %770 = vst [vmem:[%s6 + $0x70] sm:$0xff] %v748
    %771 = vst [vmem:[%s6 + $0x78] sm:$0xff] %v753
    // Predicated region
    $region34: #{forward.1} parent=1 // pred_check
      _
    $region35: #{forward.1} parent=1 // pred_check_branch
      %773 = sbr.rel (0) target = $region37
    $region36: #{forward.1} parent=1 // pred_region
      _
    $region37: #{forward.1} parent=1 // pred_fallthru
      _
    // Predicated region
    $region38: #{forward.1} parent=1 // pred_check
      _
    $region39: #{forward.1} parent=1 // pred_check_branch
      %775 = sbr.rel (0) target = $region41
    $region40: #{forward.1} parent=1 // pred_region
      _
    $region41: #{forward.1} parent=1 // pred_fallthru
      _
    %776 = vsyncpa [#allocation3], 1
    %777 = vsyncpa [#allocation5], 1

// kernel: forward.1
$region0: #{forward.1}
  #allocation0 [shape = 'u32[]', space=smem, size = 0x4, offset = 0x4, fixed_abs, tag = 'smem constant byte address 0x4 - core index']
  #allocation1 [shape = 'u32[144,128]{1,0:T(1,128)}', space=vmem, size = 0x12000, scoped, tag = 'internal scratch']
  %s0 = inlined_call_operand.vmem [shape: f32[128,32], index: 0, kind: input, shape index: {}]
  %s1 = inlined_call_operand.vmem [shape: f32[16,256], index: 1, kind: input, shape index: {}]
  %s2 = inlined_call_operand.vmem [shape: f32[32,128], index: 2, kind: input, shape index: {}]
  %s3 = inlined_call_operand.hbm [shape: f32[256,128], index: 3, kind: input, shape index: {}]
  %s4 = inlined_call_operand.vmem [shape: f32[1,128], index: 4, kind: input, shape index: {}]
  %s5 = inlined_call_operand.hbm [shape: f32[128,128], index: 5, kind: input, shape index: {}]
  %s6 = inlined_call_operand.vmem [shape: f32[128,128], index: 6, kind: output, shape index: {}]
  %s7 = sld [smem:[#allocation0]]
  $region42: #{forward.1} parent=0
    _
  %s9 = ssub.s32 1, %s7
  %s10 = scalar_select 0, %s9, %s7
  $region1: #{forward.1} parent=0
    #allocation2 [shape = 'u8[131072]{0}', space=vmem, size = 0x20000, scoped, tag = 'input window, operand 3, single buffered']
    #allocation3 [shape = 's32[1]{0}', space=sflag, size = 0x4, scoped, tag = 'scoped memory for forward.1']
    #allocation4 [shape = 'u8[65536]{0}', space=vmem, size = 0x10000, scoped, tag = 'input window, operand 5, single buffered']
    #allocation5 [shape = 's32[1]{0}', space=sflag, size = 0x4, scoped, tag = 'scoped memory for forward.1']
    %11 = vsyncpa [#allocation3], 0
    %12 = vsyncpa [#allocation5], 0
    // Predicated region
    $region2: #{forward.1} parent=1 // pred_check
      _
    $region3: #{forward.1} parent=1 // pred_check_branch
      %14 = sbr.rel (0) target = $region5
    $region4: #{forward.1} parent=1 // pred_region
      _
    $region5: #{forward.1} parent=1 // pred_fallthru
      _
    // Predicated region
    $region6: #{forward.1} parent=1 // pred_check
      _
    $region7: #{forward.1} parent=1 // pred_check_branch
      %16 = sbr.rel (0) target = $region9
    $region8: #{forward.1} parent=1 // pred_region
      _
    $region9: #{forward.1} parent=1 // pred_fallthru
      _
    // Predicated region
    $region10: #{forward.1} parent=1 // pred_check
      _
    $region11: #{forward.1} parent=1 // pred_check_branch
      %18 = sbr.rel (0) target = $region13
    $region12: #{forward.1} parent=1 // pred_region
      _
    $region13: #{forward.1} parent=1 // pred_fallthru
      _
    // Predicated region
    $region14: #{forward.1} parent=1 // pred_check
      _
    $region15: #{forward.1} parent=1 // pred_check_branch
      %20 = sbr.rel (0) target = $region17
    $region16: #{forward.1} parent=1 // pred_region
      %s22 = ssub.s32 4096, 4096
      %23 = vsyncadd [#allocation3], %s22
      %s24 = sshll.u32 [#allocation2], 4
      %s25 = int_to_ptr.vmem [resolvable:$true] %s24
      %30 = dma.hbm_to_vmem [thread:$0]  %s3, 4096, %s25, [#allocation3], 128, 128, 8
    $region17: #{forward.1} parent=1 // pred_fallthru
      _
    // Predicated region
    $region18: #{forward.1} parent=1 // pred_check
      _
    $region19: #{forward.1} parent=1 // pred_check_branch
      %32 = sbr.rel (0) target = $region21
    $region20: #{forward.1} parent=1 // pred_region
      _
    $region21: #{forward.1} parent=1 // pred_fallthru
      _
    // Predicated region
    $region22: #{forward.1} parent=1 // pred_check
      _
    $region23: #{forward.1} parent=1 // pred_check_branch
      %34 = sbr.rel (0) target = $region25
    $region24: #{forward.1} parent=1 // pred_region
      %s36 = ssub.s32 2048, 2048
      %37 = vsyncadd [#allocation5], %s36
      %s38 = sshll.u32 [#allocation4], 4
      %s39 = int_to_ptr.vmem [resolvable:$true] %s38
      %44 = dma.hbm_to_vmem [thread:$0]  %s5, 2048, %s39, [#allocation5], 128, 128, 8
    $region25: #{forward.1} parent=1 // pred_fallthru
      _
    // Predicated region
    $region26: #{forward.1} parent=1 // pred_check
      _
    $region27: #{forward.1} parent=1 // pred_check_branch
      %46 = sbr.rel (0) target = $region29
    $region28: #{forward.1} parent=1 // pred_region
      %47 = dma.done [#allocation3], 4096
    $region29: #{forward.1} parent=1 // pred_fallthru
      _
    // Predicated region
    $region30: #{forward.1} parent=1 // pred_check
      _
    $region31: #{forward.1} parent=1 // pred_check_branch
      %49 = sbr.rel (0) target = $region33
    $region32: #{forward.1} parent=1 // pred_region
      %50 = dma.done [#allocation5], 2048
    $region33: #{forward.1} parent=1 // pred_fallthru
      _
    %v51 = vld [vmem:[%s0] sm:$0xff]
    %v52 = vld [vmem:[%s0 + $0x8] sm:$0xff]
    %v53 = vld [vmem:[%s0 + $0x10] sm:$0xff]
    %v54 = vld [vmem:[%s0 + $0x18] sm:$0xff]
    %v55 = vld [vmem:[%s0 + $0x20] sm:$0xff]
    %v56 = vld [vmem:[%s0 + $0x28] sm:$0xff]
    %v57 = vld [vmem:[%s0 + $0x30] sm:$0xff]
    %v58 = vld [vmem:[%s0 + $0x38] sm:$0xff]
    %v59 = vld [vmem:[%s0 + $0x40] sm:$0xff]
    %v60 = vld [vmem:[%s0 + $0x48] sm:$0xff]
    %v61 = vld [vmem:[%s0 + $0x50] sm:$0xff]
    %v62 = vld [vmem:[%s0 + $0x58] sm:$0xff]
    %v63 = vld [vmem:[%s0 + $0x60] sm:$0xff]
    %v64 = vld [vmem:[%s0 + $0x68] sm:$0xff]
    %v65 = vld [vmem:[%s0 + $0x70] sm:$0xff]
    %v66 = vld [vmem:[%s0 + $0x78] sm:$0xff]
    %v67 = vld [vmem:[%s2] sm:$0xff]
    %v68 = vld [vmem:[%s2 + $0x8] sm:$0xff]
    %v69 = vld [vmem:[%s2 + $0x10] sm:$0xff]
    %v70 = vld [vmem:[%s2 + $0x18] sm:$0xff]
    %vm71 = vcmask 261120
    %v73 = vsel %vm71, %v51, 0
    %v76 = vsel %vm71, %v52, 0
    %v79 = vsel %vm71, %v53, 0
    %v82 = vsel %vm71, %v54, 0
    %v85 = vsel %vm71, %v55, 0
    %v88 = vsel %vm71, %v56, 0
    %v91 = vsel %vm71, %v57, 0
    %v94 = vsel %vm71, %v58, 0
    %v97 = vsel %vm71, %v59, 0
    %v100 = vsel %vm71, %v60, 0
    %v103 = vsel %vm71, %v61, 0
    %v106 = vsel %vm71, %v62, 0
    %v109 = vsel %vm71, %v63, 0
    %v112 = vsel %vm71, %v64, 0
    %v115 = vsel %vm71, %v65, 0
    %v118 = vsel %vm71, %v66, 0
    %120 = vmatprep.subr.mxu0 0.0
    %121 = vmatpush1.msra.mxu0 %v67
    %122 = vmatprep.subr.mxu0 0.0
    %123 = vmatpush1.msra.mxu0 %v68
    %124 = vmatprep.subr.mxu0 0.0
    %125 = vmatpush1.msra.mxu0 %v69
    %126 = vmatprep.subr.mxu0 0.0
    %127 = vmatpush1.msra.mxu0 %v70
    %128 = vmatprep.subr.mxu0 0.0
    %129 = vmatpush1.msra.mxu0 0.0
    %130 = vmatprep.subr.mxu0 0.0
    %131 = vmatpush1.msra.mxu0 0.0
    %132 = vmatprep.subr.mxu0 0.0
    %133 = vmatpush1.msra.mxu0 0.0
    %134 = vmatprep.subr.mxu0 0.0
    %135 = vmatpush1.msra.mxu0 0.0
    %136 = vmatprep.subr.mxu0 0.0
    %137 = vmatpush1.msra.mxu0 0.0
    %138 = vmatprep.subr.mxu0 0.0
    %139 = vmatpush1.msra.mxu0 0.0
    %140 = vmatprep.subr.mxu0 0.0
    %141 = vmatpush1.msra.mxu0 0.0
    %142 = vmatprep.subr.mxu0 0.0
    %143 = vmatpush1.msra.mxu0 0.0
    %144 = vmatprep.subr.mxu0 0.0
    %145 = vmatpush1.msra.mxu0 0.0
    %146 = vmatprep.subr.mxu0 0.0
    %147 = vmatpush1.msra.mxu0 0.0
    %148 = vmatprep.subr.mxu0 0.0
    %149 = vmatpush1.msra.mxu0 0.0
    %150 = vmatprep.subr.mxu0 0.0
    %151 = vmatpush1.msra.mxu0 0.0
    %152 = vmatprep.subr.mxu0 0.0
    %153 = vmatpush1.msra.mxu0 0.0
    %154 = vmatprep.subr.mxu0 0.0
    %155 = vmatpush1.msra.mxu0 0.0
    %156 = vmatprep.subr.mxu0 0.0
    %157 = vmatpush1.msra.mxu0 0.0
    %158 = vmatprep.subr.mxu0 0.0
    %159 = vmatpush1.msra.mxu0 0.0
    %160 = vmatprep.subr.mxu0 0.0
    %161 = vmatpush1.msra.mxu0 0.0
    %162 = vmatprep.subr.mxu0 0.0
    %163 = vmatpush1.msra.mxu0 0.0
    %164 = vmatprep.subr.mxu0 0.0
    %165 = vmatpush1.msra.mxu0 0.0
    %166 = vmatprep.subr.mxu0 0.0
    %167 = vmatpush1.msra.mxu0 0.0
    %168 = vmatprep.subr.mxu0 0.0
    %169 = vmatpush1.msra.mxu0 0.0
    %170 = vmatprep.subr.mxu0 0.0
    %171 = vmatpush1.msra.mxu0 0.0
    %172 = vmatprep.subr.mxu0 0.0
    %173 = vmatpush1.msra.mxu0 0.0
    %174 = vmatprep.subr.mxu0 0.0
    %175 = vmatpush1.msra.mxu0 0.0
    %176 = vmatprep.subr.mxu0 0.0
    %177 = vmatpush1.msra.mxu0 0.0
    %178 = vmatprep.subr.mxu0 0.0
    %179 = vmatpush1.msra.mxu0 0.0
    %180 = vmatprep.subr.mxu0 0.0
    %181 = vmatpush1.msra.mxu0 0.0
    %182 = vmatprep.subr.mxu0 0.0
    %183 = vmatpush1.msra.mxu0 0.0
    %184 = vmatprep.mubr.f32.mxu0 0.0
    %185 = vmatmul.mubr.f32.gmra.mrb[0].mxu0 %v73
    %v186 = vpop.f32.mrb[0].mxu0
    %v187 = vadd.f32 0.0, %v186
    %v188 = vpop.f32.mrb[0].mxu0
    %189 = vmatprep.mubr.f32.mxu0 0.0
    %190 = vmatmul.mubr.f32.gmra.mrb[0].mxu0 %v76
    %v191 = vpop.f32.mrb[0].mxu0
    %v192 = vadd.f32 0.0, %v191
    %v193 = vpop.f32.mrb[0].mxu0
    %194 = vmatprep.mubr.f32.mxu0 0.0
    %195 = vmatmul.mubr.f32.gmra.mrb[0].mxu0 %v79
    %v196 = vpop.f32.mrb[0].mxu0
    %v197 = vadd.f32 0.0, %v196
    %v198 = vpop.f32.mrb[0].mxu0
    %199 = vmatprep.mubr.f32.mxu0 0.0
    %200 = vmatmul.mubr.f32.gmra.mrb[0].mxu0 %v82
    %v201 = vpop.f32.mrb[0].mxu0
    %v202 = vadd.f32 0.0, %v201
    %v203 = vpop.f32.mrb[0].mxu0
    %204 = vmatprep.mubr.f32.mxu0 0.0
    %205 = vmatmul.mubr.f32.gmra.mrb[0].mxu0 %v85
    %v206 = vpop.f32.mrb[0].mxu0
    %v207 = vadd.f32 0.0, %v206
    %v208 = vpop.f32.mrb[0].mxu0
    %209 = vmatprep.mubr.f32.mxu0 0.0
    %210 = vmatmul.mubr.f32.gmra.mrb[0].mxu0 %v88
    %v211 = vpop.f32.mrb[0].mxu0
    %v212 = vadd.f32 0.0, %v211
    %v213 = vpop.f32.mrb[0].mxu0
    %214 = vmatprep.mubr.f32.mxu0 0.0
    %215 = vmatmul.mubr.f32.gmra.mrb[0].mxu0 %v91
    %v216 = vpop.f32.mrb[0].mxu0
    %v217 = vadd.f32 0.0, %v216
    %v218 = vpop.f32.mrb[0].mxu0
    %219 = vmatprep.mubr.f32.mxu0 0.0
    %220 = vmatmul.mubr.f32.gmra.mrb[0].mxu0 %v94
    %v221 = vpop.f32.mrb[0].mxu0
    %v222 = vadd.f32 0.0, %v221
    %v223 = vpop.f32.mrb[0].mxu0
    %224 = vmatprep.mubr.f32.mxu0 0.0
    %225 = vmatmul.mubr.f32.gmra.mrb[0].mxu0 %v97
    %v226 = vpop.f32.mrb[0].mxu0
    %v227 = vadd.f32 0.0, %v226
    %v228 = vpop.f32.mrb[0].mxu0
    %229 = vmatprep.mubr.f32.mxu0 0.0
    %230 = vmatmul.mubr.f32.gmra.mrb[0].mxu0 %v100
    %v231 = vpop.f32.mrb[0].mxu0
    %v232 = vadd.f32 0.0, %v231
    %v233 = vpop.f32.mrb[0].mxu0
    %234 = vmatprep.mubr.f32.mxu0 0.0
    %235 = vmatmul.mubr.f32.gmra.mrb[0].mxu0 %v103
    %v236 = vpop.f32.mrb[0].mxu0
    %v237 = vadd.f32 0.0, %v236
    %v238 = vpop.f32.mrb[0].mxu0
    %239 = vmatprep.mubr.f32.mxu0 0.0
    %240 = vmatmul.mubr.f32.gmra.mrb[0].mxu0 %v106
    %v241 = vpop.f32.mrb[0].mxu0
    %v242 = vadd.f32 0.0, %v241
    %v243 = vpop.f32.mrb[0].mxu0
    %244 = vmatprep.mubr.f32.mxu0 0.0
    %245 = vmatmul.mubr.f32.gmra.mrb[0].mxu0 %v109
    %v246 = vpop.f32.mrb[0].mxu0
    %v247 = vadd.f32 0.0, %v246
    %v248 = vpop.f32.mrb[0].mxu0
    %249 = vmatprep.mubr.f32.mxu0 0.0
    %250 = vmatmul.mubr.f32.gmra.mrb[0].mxu0 %v112
    %v251 = vpop.f32.mrb[0].mxu0
    %v252 = vadd.f32 0.0, %v251
    %v253 = vpop.f32.mrb[0].mxu0
    %254 = vmatprep.mubr.f32.mxu0 0.0
    %255 = vmatmul.mubr.f32.gmra.mrb[0].mxu0 %v115
    %v256 = vpop.f32.mrb[0].mxu0
    %v257 = vadd.f32 0.0, %v256
    %v258 = vpop.f32.mrb[0].mxu0
    %259 = vmatprep.mubr.f32.mxu0 0.0
    %260 = vmatmul.mubr.f32.gmra.mrb[0].mxu0 %v118
    %v261 = vpop.f32.mrb[0].mxu0
    %v262 = vadd.f32 0.0, %v261
    %v263 = vpop.f32.mrb[0].mxu0
    %264 = vdwg.mxu0
    %v265 = vld [vmem:[%s1] sm:$0xff]
    %v266 = vld [vmem:[%s1 + $0x8] sm:$0xff]
    %v267 = vld [vmem:[%s1 + $0x10] sm:$0xff]
    %v268 = vld [vmem:[%s1 + $0x18] sm:$0xff]
    %v269 = vld [vmem:[#allocation2] sm:$0xff]
    %v270 = vld [vmem:[#allocation2 + $0x8] sm:$0xff]
    %v271 = vld [vmem:[#allocation2 + $0x10] sm:$0xff]
    %v272 = vld [vmem:[#allocation2 + $0x18] sm:$0xff]
    %v273 = vld [vmem:[#allocation2 + $0x20] sm:$0xff]
    %v274 = vld [vmem:[#allocation2 + $0x28] sm:$0xff]
    %v275 = vld [vmem:[#allocation2 + $0x30] sm:$0xff]
    %v276 = vld [vmem:[#allocation2 + $0x38] sm:$0xff]
    %v277 = vld [vmem:[#allocation2 + $0x40] sm:$0xff]
    %v278 = vld [vmem:[#allocation2 + $0x48] sm:$0xff]
    %v279 = vld [vmem:[#allocation2 + $0x50] sm:$0xff]
    %v280 = vld [vmem:[#allocation2 + $0x58] sm:$0xff]
    %v281 = vld [vmem:[#allocation2 + $0x60] sm:$0xff]
    %v282 = vld [vmem:[#allocation2 + $0x68] sm:$0xff]
    %v283 = vld [vmem:[#allocation2 + $0x70] sm:$0xff]
    %v284 = vld [vmem:[#allocation2 + $0x78] sm:$0xff]
    %v285 = vld [vmem:[#allocation2 + $0x80] sm:$0xff]
    %v286 = vld [vmem:[#allocation2 + $0x88] sm:$0xff]
    %v287 = vld [vmem:[#allocation2 + $0x90] sm:$0xff]
    %v288 = vld [vmem:[#allocation2 + $0x98] sm:$0xff]
    %v289 = vld [vmem:[#allocation2 + $0xa0] sm:$0xff]
    %v290 = vld [vmem:[#allocation2 + $0xa8] sm:$0xff]
    %v291 = vld [vmem:[#allocation2 + $0xb0] sm:$0xff]
    %v292 = vld [vmem:[#allocation2 + $0xb8] sm:$0xff]
    %v293 = vld [vmem:[#allocation2 + $0xc0] sm:$0xff]
    %v294 = vld [vmem:[#allocation2 + $0xc8] sm:$0xff]
    %v295 = vld [vmem:[#allocation2 + $0xd0] sm:$0xff]
    %v296 = vld [vmem:[#allocation2 + $0xd8] sm:$0xff]
    %v297 = vld [vmem:[#allocation2 + $0xe0] sm:$0xff]
    %v298 = vld [vmem:[#allocation2 + $0xe8] sm:$0xff]
    %v299 = vld [vmem:[#allocation2 + $0xf0] sm:$0xff]
    %v300 = vld [vmem:[#allocation2 + $0xf8] sm:$0xff]
    %v301 = vld [vmem:[%s4] sm:$0x1]
    %v303 = vlaneseq
    %v304 = vshrl.u32 %v303, 7
    %v305 = vsub.s32 0, %v304
    %v306 = vrot.slane %v301, %v305
    %308 = vmatprep.subr.mxu0 0.0
    %309 = vmatpush1.msra.mxu0 %v269
    %310 = vmatprep.subr.mxu0 0.0
    %311 = vmatpush1.msra.mxu0 %v270
    %312 = vmatprep.subr.mxu0 0.0
    %313 = vmatpush1.msra.mxu0 %v271
    %314 = vmatprep.subr.mxu0 0.0
    %315 = vmatpush1.msra.mxu0 %v272
    %316 = vmatprep.subr.mxu0 0.0
    %317 = vmatpush1.msra.mxu0 %v273
    %318 = vmatprep.subr.mxu0 0.0
    %319 = vmatpush1.msra.mxu0 %v274
    %320 = vmatprep.subr.mxu0 0.0
    %321 = vmatpush1.msra.mxu0 %v275
    %322 = vmatprep.subr.mxu0 0.0
    %323 = vmatpush1.msra.mxu0 %v276
    %324 = vmatprep.subr.mxu0 0.0
    %325 = vmatpush1.msra.mxu0 %v277
    %326 = vmatprep.subr.mxu0 0.0
    %327 = vmatpush1.msra.mxu0 %v278
    %328 = vmatprep.subr.mxu0 0.0
    %329 = vmatpush1.msra.mxu0 %v279
    %330 = vmatprep.subr.mxu0 0.0
    %331 = vmatpush1.msra.mxu0 %v280
    %332 = vmatprep.subr.mxu0 0.0
    %333 = vmatpush1.msra.mxu0 %v281
    %334 = vmatprep.subr.mxu0 0.0
    %335 = vmatpush1.msra.mxu0 %v282
    %336 = vmatprep.subr.mxu0 0.0
    %337 = vmatpush1.msra.mxu0 %v283
    %338 = vmatprep.subr.mxu0 0.0
    %339 = vmatpush1.msra.mxu0 %v284
    %340 = vmatprep.subr.mxu0 0.0
    %341 = vmatpush1.msra.mxu0 %v285
    %342 = vmatprep.subr.mxu0 0.0
    %343 = vmatpush1.msra.mxu0 %v286
    %344 = vmatprep.subr.mxu0 0.0
    %345 = vmatpush1.msra.mxu0 %v287
    %346 = vmatprep.subr.mxu0 0.0
    %347 = vmatpush1.msra.mxu0 %v288
    %348 = vmatprep.subr.mxu0 0.0
    %349 = vmatpush1.msra.mxu0 %v289
    %350 = vmatprep.subr.mxu0 0.0
    %351 = vmatpush1.msra.mxu0 %v290
    %352 = vmatprep.subr.mxu0 0.0
    %353 = vmatpush1.msra.mxu0 %v291
    %354 = vmatprep.subr.mxu0 0.0
    %355 = vmatpush1.msra.mxu0 %v292
    %356 = vmatprep.subr.mxu0 0.0
    %357 = vmatpush1.msra.mxu0 %v293
    %358 = vmatprep.subr.mxu0 0.0
    %359 = vmatpush1.msra.mxu0 %v294
    %360 = vmatprep.subr.mxu0 0.0
    %361 = vmatpush1.msra.mxu0 %v295
    %362 = vmatprep.subr.mxu0 0.0
    %363 = vmatpush1.msra.mxu0 %v296
    %364 = vmatprep.subr.mxu0 0.0
    %365 = vmatpush1.msra.mxu0 %v297
    %366 = vmatprep.subr.mxu0 0.0
    %367 = vmatpush1.msra.mxu0 %v298
    %368 = vmatprep.subr.mxu0 0.0
    %369 = vmatpush1.msra.mxu0 %v299
    %370 = vmatprep.subr.mxu0 0.0
    %371 = vmatpush1.msra.mxu0 %v300
    %372 = vmatprep.mubr.f32.mxu0 %v266
    %373 = vmatmul.mubr.f32.gmra.mrb[0].mxu0 %v265
    %v374 = vpop.f32.mrb[0].mxu0
    %v375 = vadd.f32 %v306, %v374
    %v376 = vpop.f32.mrb[0].mxu0
    %377 = vmatprep.mubr.f32.mxu0 %v268
    %378 = vmatmul.mubr.f32.gmra.mrb[0].mxu0 %v267
    %v379 = vpop.f32.mrb[0].mxu0
    %v380 = vadd.f32 %v306, %v379
    %v381 = vpop.f32.mrb[0].mxu0
    %382 = vdwg.mxu0
    %v385 = vcombine.high %v375, %v375
    %v387 = vunpack.c.l.s4 1966171168
    %v388 = vunpack.c.0.s8 %v387
    %v389 = vlaneseq
    %v390 = vshrl.u32 %v389, 7
    %v391 = vsub.s32 %v388, %v390
    %v392 = vrot.slane %v375, %v391
    %v394 = vunpack.c.l.s4 1966171168
    %v395 = vunpack.c.0.s8 %v394
    %v396 = vlaneseq
    %v397 = vshrl.u32 %v396, 7
    %v398 = vsub.s32 %v395, %v397
    %v399 = vrot.slane %v385, %v398
    %v400 = vcombine.high %v392, %v392
    %v401 = vcombine.high %v399, %v399
    %v403 = vunpack.c.l.s4 1966171168
    %v404 = vunpack.c.0.s8 %v403
    %v405 = vlaneseq
    %v406 = vshrl.u32 %v405, 7
    %v407 = vsub.s32 %v404, %v406
    %v408 = vrot.slane %v392, %v407
    %v410 = vunpack.c.l.s4 1966171168
    %v411 = vunpack.c.0.s8 %v410
    %v412 = vlaneseq
    %v413 = vshrl.u32 %v412, 7
    %v414 = vsub.s32 %v411, %v413
    %v415 = vrot.slane %v399, %v414
    %v417 = vunpack.c.l.s4 1966171168
    %v418 = vunpack.c.0.s8 %v417
    %v419 = vlaneseq
    %v420 = vshrl.u32 %v419, 7
    %v421 = vsub.s32 %v418, %v420
    %v422 = vrot.slane %v400, %v421
    %v424 = vunpack.c.l.s4 1966171168
    %v425 = vunpack.c.0.s8 %v424
    %v426 = vlaneseq
    %v427 = vshrl.u32 %v426, 7
    %v428 = vsub.s32 %v425, %v427
    %v429 = vrot.slane %v401, %v428
    %v430 = vcombine.high %v408, %v408
    %v431 = vcombine.high %v415, %v415
    %v432 = vcombine.high %v422, %v422
    %v433 = vcombine.high %v429, %v429
    %v434 = vcombine.high %v380, %v380
    %v436 = vunpack.c.l.s4 1966171168
    %v437 = vunpack.c.0.s8 %v436
    %v438 = vlaneseq
    %v439 = vshrl.u32 %v438, 7
    %v440 = vsub.s32 %v437, %v439
    %v441 = vrot.slane %v380, %v440
    %v443 = vunpack.c.l.s4 1966171168
    %v444 = vunpack.c.0.s8 %v443
    %v445 = vlaneseq
    %v446 = vshrl.u32 %v445, 7
    %v447 = vsub.s32 %v444, %v446
    %v448 = vrot.slane %v434, %v447
    %v449 = vcombine.high %v441, %v441
    %v450 = vcombine.high %v448, %v448
    %v452 = vunpack.c.l.s4 1966171168
    %v453 = vunpack.c.0.s8 %v452
    %v454 = vlaneseq
    %v455 = vshrl.u32 %v454, 7
    %v456 = vsub.s32 %v453, %v455
    %v457 = vrot.slane %v441, %v456
    %v459 = vunpack.c.l.s4 1966171168
    %v460 = vunpack.c.0.s8 %v459
    %v461 = vlaneseq
    %v462 = vshrl.u32 %v461, 7
    %v463 = vsub.s32 %v460, %v462
    %v464 = vrot.slane %v448, %v463
    %v466 = vunpack.c.l.s4 1966171168
    %v467 = vunpack.c.0.s8 %v466
    %v468 = vlaneseq
    %v469 = vshrl.u32 %v468, 7
    %v470 = vsub.s32 %v467, %v469
    %v471 = vrot.slane %v449, %v470
    %v473 = vunpack.c.l.s4 1966171168
    %v474 = vunpack.c.0.s8 %v473
    %v475 = vlaneseq
    %v476 = vshrl.u32 %v475, 7
    %v477 = vsub.s32 %v474, %v476
    %v478 = vrot.slane %v450, %v477
    %v479 = vcombine.high %v457, %v457
    %v480 = vcombine.high %v464, %v464
    %v481 = vcombine.high %v471, %v471
    %v482 = vcombine.high %v478, %v478
    %v483 = vlaneseq
    %v484 = vshrl.u32 %v483, 7
    %v485 = vsub.s32 0, %v484
    %v486 = vrot.slane %v408, %v485
    %v487 = vlaneseq
    %v488 = vshrl.u32 %v487, 7
    %v489 = vsub.s32 0, %v488
    %v490 = vrot.slane %v422, %v489
    %v491 = vlaneseq
    %v492 = vshrl.u32 %v491, 7
    %v493 = vsub.s32 0, %v492
    %v494 = vrot.slane %v430, %v493
    %v495 = vlaneseq
    %v496 = vshrl.u32 %v495, 7
    %v497 = vsub.s32 0, %v496
    %v498 = vrot.slane %v432, %v497
    %v499 = vlaneseq
    %v500 = vshrl.u32 %v499, 7
    %v501 = vsub.s32 0, %v500
    %v502 = vrot.slane %v415, %v501
    %v503 = vlaneseq
    %v504 = vshrl.u32 %v503, 7
    %v505 = vsub.s32 0, %v504
    %v506 = vrot.slane %v429, %v505
    %v507 = vlaneseq
    %v508 = vshrl.u32 %v507, 7
    %v509 = vsub.s32 0, %v508
    %v510 = vrot.slane %v431, %v509
    %v511 = vlaneseq
    %v512 = vshrl.u32 %v511, 7
    %v513 = vsub.s32 0, %v512
    %v514 = vrot.slane %v433, %v513
    %v515 = vlaneseq
    %v516 = vshrl.u32 %v515, 7
    %v517 = vsub.s32 0, %v516
    %v518 = vrot.slane %v457, %v517
    %v519 = vlaneseq
    %v520 = vshrl.u32 %v519, 7
    %v521 = vsub.s32 0, %v520
    %v522 = vrot.slane %v471, %v521
    %v523 = vlaneseq
    %v524 = vshrl.u32 %v523, 7
    %v525 = vsub.s32 0, %v524
    %v526 = vrot.slane %v479, %v525
    %v527 = vlaneseq
    %v528 = vshrl.u32 %v527, 7
    %v529 = vsub.s32 0, %v528
    %v530 = vrot.slane %v481, %v529
    %v531 = vlaneseq
    %v532 = vshrl.u32 %v531, 7
    %v533 = vsub.s32 0, %v532
    %v534 = vrot.slane %v464, %v533
    %v535 = vlaneseq
    %v536 = vshrl.u32 %v535, 7
    %v537 = vsub.s32 0, %v536
    %v538 = vrot.slane %v478, %v537
    %v539 = vlaneseq
    %v540 = vshrl.u32 %v539, 7
    %v541 = vsub.s32 0, %v540
    %v542 = vrot.slane %v480, %v541
    %v543 = vlaneseq
    %v544 = vshrl.u32 %v543, 7
    %v545 = vsub.s32 0, %v544
    %v546 = vrot.slane %v482, %v545
    %v563 = vadd.f32 %v187, %v486
    %v564 = vadd.f32 %v192, %v490
    %v565 = vadd.f32 %v197, %v494
    %v566 = vadd.f32 %v202, %v498
    %v567 = vadd.f32 %v207, %v502
    %v568 = vadd.f32 %v212, %v506
    %v569 = vadd.f32 %v217, %v510
    %v570 = vadd.f32 %v222, %v514
    %v571 = vadd.f32 %v227, %v518
    %v572 = vadd.f32 %v232, %v522
    %v573 = vadd.f32 %v237, %v526
    %v574 = vadd.f32 %v242, %v530
    %v575 = vadd.f32 %v247, %v534
    %v576 = vadd.f32 %v252, %v538
    %v577 = vadd.f32 %v257, %v542
    %v578 = vadd.f32 %v262, %v546
    %v579 = vtanh.pop %v563
    %v580 = vtanh.pop %v564
    %v581 = vtanh.pop %v565
    %v582 = vtanh.pop %v566
    %v583 = vtanh.pop %v567
    %v584 = vtanh.pop %v568
    %v585 = vtanh.pop %v569
    %v586 = vtanh.pop %v570
    %v587 = vtanh.pop %v571
    %v588 = vtanh.pop %v572
    %v589 = vtanh.pop %v573
    %v590 = vtanh.pop %v574
    %v591 = vtanh.pop %v575
    %v592 = vtanh.pop %v576
    %v593 = vtanh.pop %v577
    %v594 = vtanh.pop %v578
    %v595 = vld [vmem:[#allocation4] sm:$0xff]
    %v596 = vld [vmem:[#allocation4 + $0x8] sm:$0xff]
    %v597 = vld [vmem:[#allocation4 + $0x10] sm:$0xff]
    %v598 = vld [vmem:[#allocation4 + $0x18] sm:$0xff]
    %v599 = vld [vmem:[#allocation4 + $0x20] sm:$0xff]
    %v600 = vld [vmem:[#allocation4 + $0x28] sm:$0xff]
    %v601 = vld [vmem:[#allocation4 + $0x30] sm:$0xff]
    %v602 = vld [vmem:[#allocation4 + $0x38] sm:$0xff]
    %v603 = vld [vmem:[#allocation4 + $0x40] sm:$0xff]
    %v604 = vld [vmem:[#allocation4 + $0x48] sm:$0xff]
    %v605 = vld [vmem:[#allocation4 + $0x50] sm:$0xff]
    %v606 = vld [vmem:[#allocation4 + $0x58] sm:$0xff]
    %v607 = vld [vmem:[#allocation4 + $0x60] sm:$0xff]
    %v608 = vld [vmem:[#allocation4 + $0x68] sm:$0xff]
    %v609 = vld [vmem:[#allocation4 + $0x70] sm:$0xff]
    %v610 = vld [vmem:[#allocation4 + $0x78] sm:$0xff]
    %611 = vmatprep.subr.mxu0 0.0
    %612 = vmatpush1.msra.mxu0 %v595
    %613 = vmatprep.subr.mxu0 0.0
    %614 = vmatpush1.msra.mxu0 %v596
    %615 = vmatprep.subr.mxu0 0.0
    %616 = vmatpush1.msra.mxu0 %v597
    %617 = vmatprep.subr.mxu0 0.0
    %618 = vmatpush1.msra.mxu0 %v598
    %619 = vmatprep.subr.mxu0 0.0
    %620 = vmatpush1.msra.mxu0 %v599
    %621 = vmatprep.subr.mxu0 0.0
    %622 = vmatpush1.msra.mxu0 %v600
    %623 = vmatprep.subr.mxu0 0.0
    %624 = vmatpush1.msra.mxu0 %v601
    %625 = vmatprep.subr.mxu0 0.0
    %626 = vmatpush1.msra.mxu0 %v602
    %627 = vmatprep.subr.mxu0 0.0
    %628 = vmatpush1.msra.mxu0 %v603
    %629 = vmatprep.subr.mxu0 0.0
    %630 = vmatpush1.msra.mxu0 %v604
    %631 = vmatprep.subr.mxu0 0.0
    %632 = vmatpush1.msra.mxu0 %v605
    %633 = vmatprep.subr.mxu0 0.0
    %634 = vmatpush1.msra.mxu0 %v606
    %635 = vmatprep.subr.mxu0 0.0
    %636 = vmatpush1.msra.mxu0 %v607
    %637 = vmatprep.subr.mxu0 0.0
    %638 = vmatpush1.msra.mxu0 %v608
    %639 = vmatprep.subr.mxu0 0.0
    %640 = vmatpush1.msra.mxu0 %v609
    %641 = vmatprep.subr.mxu0 0.0
    %642 = vmatpush1.msra.mxu0 %v610
    %643 = vmatprep.subr.mxu0 0.0
    %644 = vmatpush1.msra.mxu0 0.0
    %645 = vmatprep.subr.mxu0 0.0
    %646 = vmatpush1.msra.mxu0 0.0
    %647 = vmatprep.subr.mxu0 0.0
    %648 = vmatpush1.msra.mxu0 0.0
    %649 = vmatprep.subr.mxu0 0.0
    %650 = vmatpush1.msra.mxu0 0.0
    %651 = vmatprep.subr.mxu0 0.0
    %652 = vmatpush1.msra.mxu0 0.0
    %653 = vmatprep.subr.mxu0 0.0
    %654 = vmatpush1.msra.mxu0 0.0
    %655 = vmatprep.subr.mxu0 0.0
    %656 = vmatpush1.msra.mxu0 0.0
    %657 = vmatprep.subr.mxu0 0.0
    %658 = vmatpush1.msra.mxu0 0.0
    %659 = vmatprep.subr.mxu0 0.0
    %660 = vmatpush1.msra.mxu0 0.0
    %661 = vmatprep.subr.mxu0 0.0
    %662 = vmatpush1.msra.mxu0 0.0
    %663 = vmatprep.subr.mxu0 0.0
    %664 = vmatpush1.msra.mxu0 0.0
    %665 = vmatprep.subr.mxu0 0.0
    %666 = vmatpush1.msra.mxu0 0.0
    %667 = vmatprep.subr.mxu0 0.0
    %668 = vmatpush1.msra.mxu0 0.0
    %669 = vmatprep.subr.mxu0 0.0
    %670 = vmatpush1.msra.mxu0 0.0
    %671 = vmatprep.subr.mxu0 0.0
    %672 = vmatpush1.msra.mxu0 0.0
    %673 = vmatprep.subr.mxu0 0.0
    %674 = vmatpush1.msra.mxu0 0.0
    %675 = vmatprep.mubr.f32.mxu0 0.0
    %676 = vmatmul.mubr.f32.gmra.mrb[0].mxu0 %v579
    %v677 = vpop.f32.mrb[0].mxu0
    %v678 = vadd.f32 0.0, %v677
    %v679 = vpop.f32.mrb[0].mxu0
    %680 = vmatprep.mubr.f32.mxu0 0.0
    %681 = vmatmul.mubr.f32.gmra.mrb[0].mxu0 %v580
    %v682 = vpop.f32.mrb[0].mxu0
    %v683 = vadd.f32 0.0, %v682
    %v684 = vpop.f32.mrb[0].mxu0
    %685 = vmatprep.mubr.f32.mxu0 0.0
    %686 = vmatmul.mubr.f32.gmra.mrb[0].mxu0 %v581
    %v687 = vpop.f32.mrb[0].mxu0
    %v688 = vadd.f32 0.0, %v687
    %v689 = vpop.f32.mrb[0].mxu0
    %690 = vmatprep.mubr.f32.mxu0 0.0
    %691 = vmatmul.mubr.f32.gmra.mrb[0].mxu0 %v582
    %v692 = vpop.f32.mrb[0].mxu0
    %v693 = vadd.f32 0.0, %v692
    %v694 = vpop.f32.mrb[0].mxu0
    %695 = vmatprep.mubr.f32.mxu0 0.0
    %696 = vmatmul.mubr.f32.gmra.mrb[0].mxu0 %v583
    %v697 = vpop.f32.mrb[0].mxu0
    %v698 = vadd.f32 0.0, %v697
    %v699 = vpop.f32.mrb[0].mxu0
    %700 = vmatprep.mubr.f32.mxu0 0.0
    %701 = vmatmul.mubr.f32.gmra.mrb[0].mxu0 %v584
    %v702 = vpop.f32.mrb[0].mxu0
    %v703 = vadd.f32 0.0, %v702
    %v704 = vpop.f32.mrb[0].mxu0
    %705 = vmatprep.mubr.f32.mxu0 0.0
    %706 = vmatmul.mubr.f32.gmra.mrb[0].mxu0 %v585
    %v707 = vpop.f32.mrb[0].mxu0
    %v708 = vadd.f32 0.0, %v707
    %v709 = vpop.f32.mrb[0].mxu0
    %710 = vmatprep.mubr.f32.mxu0 0.0
    %711 = vmatmul.mubr.f32.gmra.mrb[0].mxu0 %v586
    %v712 = vpop.f32.mrb[0].mxu0
    %v713 = vadd.f32 0.0, %v712
    %v714 = vpop.f32.mrb[0].mxu0
    %715 = vmatprep.mubr.f32.mxu0 0.0
    %716 = vmatmul.mubr.f32.gmra.mrb[0].mxu0 %v587
    %v717 = vpop.f32.mrb[0].mxu0
    %v718 = vadd.f32 0.0, %v717
    %v719 = vpop.f32.mrb[0].mxu0
    %720 = vmatprep.mubr.f32.mxu0 0.0
    %721 = vmatmul.mubr.f32.gmra.mrb[0].mxu0 %v588
    %v722 = vpop.f32.mrb[0].mxu0
    %v723 = vadd.f32 0.0, %v722
    %v724 = vpop.f32.mrb[0].mxu0
    %725 = vmatprep.mubr.f32.mxu0 0.0
    %726 = vmatmul.mubr.f32.gmra.mrb[0].mxu0 %v589
    %v727 = vpop.f32.mrb[0].mxu0
    %v728 = vadd.f32 0.0, %v727
    %v729 = vpop.f32.mrb[0].mxu0
    %730 = vmatprep.mubr.f32.mxu0 0.0
    %731 = vmatmul.mubr.f32.gmra.mrb[0].mxu0 %v590
    %v732 = vpop.f32.mrb[0].mxu0
    %v733 = vadd.f32 0.0, %v732
    %v734 = vpop.f32.mrb[0].mxu0
    %735 = vmatprep.mubr.f32.mxu0 0.0
    %736 = vmatmul.mubr.f32.gmra.mrb[0].mxu0 %v591
    %v737 = vpop.f32.mrb[0].mxu0
    %v738 = vadd.f32 0.0, %v737
    %v739 = vpop.f32.mrb[0].mxu0
    %740 = vmatprep.mubr.f32.mxu0 0.0
    %741 = vmatmul.mubr.f32.gmra.mrb[0].mxu0 %v592
    %v742 = vpop.f32.mrb[0].mxu0
    %v743 = vadd.f32 0.0, %v742
    %v744 = vpop.f32.mrb[0].mxu0
    %745 = vmatprep.mubr.f32.mxu0 0.0
    %746 = vmatmul.mubr.f32.gmra.mrb[0].mxu0 %v593
    %v747 = vpop.f32.mrb[0].mxu0
    %v748 = vadd.f32 0.0, %v747
    %v749 = vpop.f32.mrb[0].mxu0
    %750 = vmatprep.mubr.f32.mxu0 0.0
    %751 = vmatmul.mubr.f32.gmra.mrb[0].mxu0 %v594
    %v752 = vpop.f32.mrb[0].mxu0
    %v753 = vadd.f32 0.0, %v752
    %v754 = vpop.f32.mrb[0].mxu0
    %755 = vdwg.mxu0
    %756 = vst [vmem:[%s6] sm:$0xff] %v678
    %757 = vst [vmem:[%s6 + $0x8] sm:$0xff] %v683
    %758 = vst [vmem:[%s6 + $0x10] sm:$0xff] %v688
    %759 = vst [vmem:[%s6 + $0x18] sm:$0xff] %v693
    %760 = vst [vmem:[%s6 + $0x20] sm:$0xff] %v698
    %761 = vst [vmem:[%s6 + $0x28] sm:$0xff] %v703
    %762 = vst [vmem:[%s6 + $0x30] sm:$0xff] %v708
    %763 = vst [vmem:[%s6 + $0x38] sm:$0xff] %v713
    %764 = vst [vmem:[%s6 + $0x40] sm:$0xff] %v718
    %765 = vst [vmem:[%s6 + $0x48] sm:$0xff] %v723
    %766 = vst [vmem:[%s6 + $0x50] sm:$0xff] %v728
    %767 = vst [vmem:[%s6 + $0x58] sm:$0xff] %v733
    %768 = vst [vmem:[%s6 + $0x60] sm:$0xff] %v738
    %769 = vst [vmem:[%s6 + $0x68] sm:$0xff] %v743
    %770 = vst [vmem:[%s6 + $0x70] sm:$0xff] %v748
    %771 = vst [vmem:[%s6 + $0x78] sm:$0xff] %v753
    // Predicated region
    $region34: #{forward.1} parent=1 // pred_check
      _
    $region35: #{forward.1} parent=1 // pred_check_branch
      %773 = sbr.rel (0) target = $region37
    $region36: #{forward.1} parent=1 // pred_region
      _
    $region37: #{forward.1} parent=1 // pred_fallthru
      _
    // Predicated region
    $region38: #{forward.1} parent=1 // pred_check
      _
    $region39: #{forward.1} parent=1 // pred_check_branch
      %775 = sbr.rel (0) target = $region41
    $region40: #{forward.1} parent=1 // pred_region
      _
    $region41: #{forward.1} parent=1 // pred_fallthru
      _
    %776 = vsyncpa [#allocation3], 1
    %777 = vsyncpa [#allocation5], 1

</llo_original>
